<compile_context>
chip_gen: v7x
topology: tpu7x:2x2x1
jax: 0.10.0
libtpu: 0.0.40
codegen_flags: <defaults>
</compile_context>

<pallas_src>
import functools
import math

import jax
import jax.numpy as jnp
import numpy as np
from jax.experimental import pallas as pl
from jax.experimental.pallas import tpu as pltpu


def block_kernel(x_ref,
                 ln1_w_ref, ln1_b_ref,
                 wqkv_ref, bqkv_ref,
                 wp_ref, bp_ref, tw_ref,
                 ln2_w_ref, ln2_b_ref,
                 w1_ref, b1_ref, w2_ref, b2_ref,
                 o_ref,
                 *, n_head, fuse_heads):
    Bb, T, C = x_ref.shape
    hd = C // n_head
    R = Bb * T

    # (Bb, T, C) -> (Bb*T, C): leading-dim merge, free; rows stay lane-dense.
    x2 = x_ref[...].astype(jnp.float32).reshape(R, C)

    def layernorm(h, w, b):
        # single-pass statistics: E[x^2] - E[x]^2 (halves the cross-lane reductions)
        mu = jnp.mean(h, axis=-1, keepdims=True)
        var = jnp.mean(h * h, axis=-1, keepdims=True) - mu * mu
        return (h - mu) * jax.lax.rsqrt(var + 1e-5) * w + b

    # ---------------- attention branch ----------------
    h1 = layernorm(x2, ln1_w_ref[...], ln1_b_ref[...])           # (R, C) f32

    # time_shift (ZeroPad2d((0,0,1,0)) + crop) on the first C//2 channels:
    # XLU sublane roll + two broadcast-mask selects.  Masking rows with t == 0 to zero
    # also kills the wrap / cross-batch leak of the roll.
    rolled = pltpu.roll(h1, shift=1, axis=0)
    first_row = (jax.lax.broadcasted_iota(jnp.int32, (R, 1), 0) % T) == 0   # (R, 1)
    lo_half = jax.lax.broadcasted_iota(jnp.int32, (1, C), 1) < (C // 2)     # (1, C)
    shifted = jnp.where(first_row, 0.0, rolled)
    xm = jnp.where(lo_half, shifted, h1)

    # fused QKV projection: one MXU launch, bf16 operands, f32 accumulation.
    qkv = jnp.dot(xm.astype(jnp.bfloat16), wqkv_ref[...],
                  preferred_element_type=jnp.float32) + bqkv_ref[...]       # (R, 3C)
    scale = 1.0 / math.sqrt(hd)
    q = (qkv[:, :C] * scale).astype(jnp.bfloat16)                # pre-scale q once
    k = qkv[:, C:2 * C].astype(jnp.bfloat16)
    v = qkv[:, 2 * C:].astype(jnp.bfloat16)

    row_t = jax.lax.broadcasted_iota(jnp.int32, (T, T), 0)
    col_t = jax.lax.broadcasted_iota(jnp.int32, (T, T), 1)
    causal = col_t <= row_t                                      # (T, T)

    if fuse_heads:
        # Head-batched attention: one einsum over all heads (no per-head lane slices,
        # no concatenate).  tw (NH,T,T) broadcasts over the batch dim.
        q4 = q.reshape(Bb, T, n_head, hd)
        k4 = k.reshape(Bb, T, n_head, hd)
        v4 = v.reshape(Bb, T, n_head, hd)
        att = jnp.einsum('bthd,bshd->bhts', q4, k4,
                         preferred_element_type=jnp.float32)     # (Bb, NH, T, T)
        att = jnp.where(causal[None, None], att, -1e30)
        att = att - jnp.max(att, axis=-1, keepdims=True)
        p = jnp.exp(att)
        p = p * pl.reciprocal(jnp.sum(p, axis=-1, keepdims=True), approx=True)
        p = (p * tw_ref[...]).astype(jnp.bfloat16)               # post-softmax time_weight
        y = jnp.einsum('bhts,bshd->bthd', p, v4,
                       preferred_element_type=jnp.float32)       # (Bb, T, NH, hd)
        y2 = y.reshape(R, C)
    else:
        # Fallback (older jax that cannot lower 2-batch-dim dot_general in Pallas).
        q3 = q.reshape(Bb, T, C)
        k3 = k.reshape(Bb, T, C)
        v3 = v.reshape(Bb, T, C)
        heads = []
        for h in range(n_head):
            sl = slice(h * hd, (h + 1) * hd)
            att = jnp.einsum('btd,bsd->bts', q3[:, :, sl], k3[:, :, sl],
                             preferred_element_type=jnp.float32)
            att = jnp.where(causal[None], att, -1e30)
            att = att - jnp.max(att, axis=-1, keepdims=True)
            p = jnp.exp(att)
            p = p * pl.reciprocal(jnp.sum(p, axis=-1, keepdims=True), approx=True)
            p = (p * tw_ref[h]).astype(jnp.bfloat16)
            heads.append(jnp.einsum('bts,bsd->btd', p, v3[:, :, sl],
                                    preferred_element_type=jnp.float32))
        y2 = jnp.concatenate(heads, axis=-1).reshape(R, C)

    y = jnp.dot(y2.astype(jnp.bfloat16), wp_ref[...],
                preferred_element_type=jnp.float32) + bp_ref[...]
    x1 = x2 + y                                                  # residual 1

    # ---------------- MLP branch ----------------
    h2 = layernorm(x1, ln2_w_ref[...], ln2_b_ref[...])
    m = jnp.dot(h2.astype(jnp.bfloat16), w1_ref[...],
                preferred_element_type=jnp.float32) + b1_ref[...]
    # exact GELU (nn.GELU default); tanh-approx would change semantics vs. PyTorch.
    m = 0.5 * m * (1.0 + jax.lax.erf(m * (1.0 / math.sqrt(2.0))))
    m = jnp.dot(m.astype(jnp.bfloat16), w2_ref[...],
                preferred_element_type=jnp.float32) + b2_ref[...]
    o_ref[...] = (x1 + m).reshape(Bb, T, C).astype(o_ref.dtype)  # residual 2


def _pick_batch_block(B, T, C, n_head, weight_bytes, target_rows, budget_bytes):
    """Largest Bb that divides B, keeps >=2 grid steps (when B>=2) and fits the budget."""
    cand = max(1, min(B, max(1, target_rows // max(T, 1))))
    min_steps = 2 if B >= 2 else 1
    for bb in range(cand, 0, -1):
        if B % bb:
            continue
        if B // bb < min_steps:
            continue
        R = bb * T
        est = (weight_bytes                       # resident weights, single-buffered
               + 2 * 2 * R * C * 4                # double-buffered x / out blocks (f32)
               + R * 3 * C * 4                    # qkv activations (f32)
               + R * 4 * C * 4                    # MLP hidden (f32)
               + 2 * bb * n_head * T * T * 4      # attention scores / probs (f32)
               + 4 * R * C * 4)                   # misc live f32 temporaries
        if est <= budget_bytes:
            return bb
    return 1


def run_block(x, params, n_head, *, batch_block=None, target_rows=512,
              vmem_budget_bytes=32 * 1024 * 1024):
    B, T, C = x.shape

    # Host-side weight prep: fuse QKV once, cast the four big matmul weights to bf16.
    wqkv = jnp.concatenate([params["wq"], params["wk"], params["wv"]], axis=1)
    bqkv = jnp.concatenate([params["bq"], params["bk"], params["bv"]], axis=1)
    weights = [
        params["ln1_w"], params["ln1_b"],
        wqkv.astype(jnp.bfloat16), bqkv,
        params["wp"].astype(jnp.bfloat16), params["bp"], params["tw"],
        params["ln2_w"], params["ln2_b"],
        params["w1"].astype(jnp.bfloat16), params["b1"],
        params["w2"].astype(jnp.bfloat16), params["b2"],
    ]
    weight_bytes = sum(int(np.prod(a.shape)) * a.dtype.itemsize for a in weights)

    if batch_block is None:
        batch_block = _pick_batch_block(B, T, C, n_head, weight_bytes,
                                        target_rows, vmem_budget_bytes)
    while B % batch_block:
        batch_block -= 1
    Bb = batch_block

    def rep_spec(a):
        nd = a.ndim
        # constant index -> VMEM-resident; Buffered(1): no double-buffering of weights.
        return pl.BlockSpec(a.shape, lambda b, _n=nd: (0,) * _n,
                            pipeline_mode=pl.Buffered(1))

    in_specs = ([pl.BlockSpec((Bb, T, C), lambda b: (b, 0, 0))]
                + [rep_spec(a) for a in weights])
    out_spec = pl.BlockSpec((Bb, T, C), lambda b: (b, 0, 0))

    def build(fuse_heads):
        return pl.pallas_call(
            functools.partial(block_kernel, n_head=n_head, fuse_heads=fuse_heads),
            out_shape=jax.ShapeDtypeStruct((B, T, C), jnp.float32),
            grid=(B // Bb,),
            in_specs=in_specs,
            out_specs=out_spec,
            compiler_params=pltpu.CompilerParams(
                dimension_semantics=("parallel",),
                vmem_limit_bytes=48 * 1024 * 1024,
            ),
        )

    # Primary path: head-batched einsums.  Fallback exists only for jax versions whose
    # Mosaic lowering does not support the 2-batch-dim dot_general; same math either way.
    try:
        out = build(True)(x, *weights)
        return jax.block_until_ready(out)
    except Exception:  # lowering-support guard, not a numerics guard
        out = build(False)(x, *weights)
        return jax.block_until_ready(out)


def block_ref(x, p, n_head):
    """Pure-JAX reference reproducing the PyTorch Block.forward (eval mode)."""
    B, T, C = x.shape
    hd = C // n_head

    def ln(h, w, b):
        mu = jnp.mean(h, -1, keepdims=True)
        var = jnp.mean((h - mu) ** 2, -1, keepdims=True)
        return (h - mu) / jnp.sqrt(var + 1e-5) * w + b

    h1 = ln(x, p["ln1_w"], p["ln1_b"])
    shifted = jnp.concatenate([jnp.zeros((B, 1, C), x.dtype), h1[:, :-1, :]], axis=1)
    xm = jnp.concatenate([shifted[:, :, : C // 2], h1[:, :, C // 2:]], axis=2)

    q = (xm @ p["wq"] + p["bq"]).reshape(B, T, n_head, hd).transpose(0, 2, 1, 3)
    k = (xm @ p["wk"] + p["bk"]).reshape(B, T, n_head, hd).transpose(0, 2, 1, 3)
    v = (xm @ p["wv"] + p["bv"]).reshape(B, T, n_head, hd).transpose(0, 2, 1, 3)

    att = (q @ jnp.swapaxes(k, -2, -1)) / math.sqrt(hd)
    mask = jnp.tril(jnp.ones((T, T), bool))
    att = jnp.where(mask[None, None], att, -jnp.inf)
    att = jax.nn.softmax(att, axis=-1)
    att = att * p["tw"][None, :, :T, :T]
    y = (att @ v).transpose(0, 2, 1, 3).reshape(B, T, C)
    y = y @ p["wp"] + p["bp"]
    x1 = x + y

    h2 = ln(x1, p["ln2_w"], p["ln2_b"])
    m = h2 @ p["w1"] + p["b1"]
    m = 0.5 * m * (1.0 + jax.lax.erf(m / math.sqrt(2.0)))
    m = m @ p["w2"] + p["b2"]
    return x1 + m


if __name__ == "__main__":
    B, T, C, NH = 2, 8, 32, 4          # batch, seq (= block_size), n_embd, n_head
    key = jax.random.PRNGKey(0)
    ks = jax.random.split(key, 12)

    def w(k, shape, std=0.02):
        return (std * jax.random.normal(k, shape)).astype(jnp.float32)

    x = jax.random.normal(ks[0], (B, T, C), jnp.float32)

    params = dict(
        ln1_w=jnp.ones((1, C), jnp.float32),
        ln1_b=jnp.zeros((1, C), jnp.float32),
        wq=w(ks[1], (C, C)), bq=w(ks[2], (1, C), 0.01),
        wk=w(ks[3], (C, C)), bk=w(ks[4], (1, C), 0.01),
        wv=w(ks[5], (C, C)), bv=w(ks[6], (1, C), 0.01),
        wp=w(ks[7], (C, C)), bp=jnp.zeros((1, C), jnp.float32),
        tw=(1.0 + 0.05 * jax.random.normal(ks[8], (NH, T, T))).astype(jnp.float32),
        ln2_w=jnp.ones((1, C), jnp.float32),
        ln2_b=jnp.zeros((1, C), jnp.float32),
        w1=w(ks[9], (C, 4 * C)), b1=jnp.zeros((1, 4 * C), jnp.float32),
        w2=w(ks[10], (4 * C, C)), b2=jnp.zeros((1, C), jnp.float32),
    )

    out = run_block(x, params, NH)
    out = jax.block_until_ready(out)

    ref = block_ref(x, params, NH)
    # 2e-3 tolerance covers bf16 matmul operands (f32 accumulation) and the
    # approx-reciprocal softmax denominator; LN/softmax/residuals stay f32.
    np.testing.assert_allclose(np.asarray(out), np.asarray(ref), rtol=2e-3, atol=2e-3)

    print("KERNEL_OK")
</pallas_src>

<mosaic_0001>
module attributes {stable_mosaic.version = 11 : i64} {
  func.func @block_kernel(%arg0: i32, %arg1: memref<1x8x32xf32, #tpu.memory_space<vmem>>, %arg2: memref<1x32xf32, #tpu.memory_space<vmem>>, %arg3: memref<1x32xf32, #tpu.memory_space<vmem>>, %arg4: memref<32x96xbf16, #tpu.memory_space<vmem>>, %arg5: memref<1x96xf32, #tpu.memory_space<vmem>>, %arg6: memref<32x32xbf16, #tpu.memory_space<vmem>>, %arg7: memref<1x32xf32, #tpu.memory_space<vmem>>, %arg8: memref<4x8x8xf32, #tpu.memory_space<vmem>>, %arg9: memref<1x32xf32, #tpu.memory_space<vmem>>, %arg10: memref<1x32xf32, #tpu.memory_space<vmem>>, %arg11: memref<32x128xbf16, #tpu.memory_space<vmem>>, %arg12: memref<1x128xf32, #tpu.memory_space<vmem>>, %arg13: memref<128x32xbf16, #tpu.memory_space<vmem>>, %arg14: memref<1x32xf32, #tpu.memory_space<vmem>>, %arg15: memref<1x8x32xf32, #tpu.memory_space<vmem>>) attributes {dimension_semantics = [#tpu.dimension_semantics<parallel>], iteration_bounds = array<i64: 2>, scalar_prefetch = 0 : i64, scratch_operands = 0 : i64, tpu.core_type = #tpu.core_type<tc>, window_params = [{transform_indices = @transform_0, window_bounds = array<i64: 1, 8, 32>}, {pipeline_mode = #tpu.pipeline_mode<synchronous>, transform_indices = @transform_1, window_bounds = array<i64: 1, 32>}, {pipeline_mode = #tpu.pipeline_mode<synchronous>, transform_indices = @transform_2, window_bounds = array<i64: 1, 32>}, {pipeline_mode = #tpu.pipeline_mode<synchronous>, transform_indices = @transform_3, window_bounds = array<i64: 32, 96>}, {pipeline_mode = #tpu.pipeline_mode<synchronous>, transform_indices = @transform_4, window_bounds = array<i64: 1, 96>}, {pipeline_mode = #tpu.pipeline_mode<synchronous>, transform_indices = @transform_5, window_bounds = array<i64: 32, 32>}, {pipeline_mode = #tpu.pipeline_mode<synchronous>, transform_indices = @transform_6, window_bounds = array<i64: 1, 32>}, {pipeline_mode = #tpu.pipeline_mode<synchronous>, transform_indices = @transform_7, window_bounds = array<i64: 4, 8, 8>}, {pipeline_mode = #tpu.pipeline_mode<synchronous>, transform_indices = @transform_8, window_bounds = array<i64: 1, 32>}, {pipeline_mode = #tpu.pipeline_mode<synchronous>, transform_indices = @transform_9, window_bounds = array<i64: 1, 32>}, {pipeline_mode = #tpu.pipeline_mode<synchronous>, transform_indices = @transform_10, window_bounds = array<i64: 32, 128>}, {pipeline_mode = #tpu.pipeline_mode<synchronous>, transform_indices = @transform_11, window_bounds = array<i64: 1, 128>}, {pipeline_mode = #tpu.pipeline_mode<synchronous>, transform_indices = @transform_12, window_bounds = array<i64: 128, 32>}, {pipeline_mode = #tpu.pipeline_mode<synchronous>, transform_indices = @transform_13, window_bounds = array<i64: 1, 32>}, {transform_indices = @transform_14, window_bounds = array<i64: 1, 8, 32>}]} {
    %c0 = arith.constant 0 : index
    %c0_0 = arith.constant 0 : index
    %c0_1 = arith.constant 0 : index
    %0 = vector.load %arg1[%c0, %c0_0, %c0_1] : memref<1x8x32xf32, #tpu.memory_space<vmem>>, vector<1x8x32xf32>
    %1 = vector.shape_cast %0 : vector<1x8x32xf32> to vector<8x32xf32>
    %c0_2 = arith.constant 0 : index
    %c0_3 = arith.constant 0 : index
    %2 = vector.load %arg2[%c0_2, %c0_3] : memref<1x32xf32, #tpu.memory_space<vmem>>, vector<1x32xf32>
    %c0_4 = arith.constant 0 : index
    %c0_5 = arith.constant 0 : index
    %3 = vector.load %arg3[%c0_4, %c0_5] : memref<1x32xf32, #tpu.memory_space<vmem>>, vector<1x32xf32>
    %cst = arith.constant dense<0.000000e+00> : vector<8xf32>
    %4 = vector.multi_reduction <add>, %1, %cst [1] : vector<8x32xf32> to vector<8xf32>
    %5 = vector.shape_cast %4 : vector<8xf32> to vector<8x1xf32>
    %cst_6 = arith.constant 3.200000e+01 : f32
    %6 = vector.broadcast %cst_6 : f32 to vector<8x1xf32>
    %7 = arith.divf %5, %6 : vector<8x1xf32>
    %8 = arith.mulf %1, %1 : vector<8x32xf32>
    %cst_7 = arith.constant dense<0.000000e+00> : vector<8xf32>
    %9 = vector.multi_reduction <add>, %8, %cst_7 [1] : vector<8x32xf32> to vector<8xf32>
    %10 = vector.shape_cast %9 : vector<8xf32> to vector<8x1xf32>
    %cst_8 = arith.constant 3.200000e+01 : f32
    %11 = vector.broadcast %cst_8 : f32 to vector<8x1xf32>
    %12 = arith.divf %10, %11 : vector<8x1xf32>
    %13 = arith.mulf %7, %7 : vector<8x1xf32>
    %14 = arith.subf %12, %13 : vector<8x1xf32>
    %15 = vector.broadcast %7 : vector<8x1xf32> to vector<8x32xf32>
    %16 = arith.subf %1, %15 : vector<8x32xf32>
    %cst_9 = arith.constant 9.99999974E-6 : f32
    %17 = vector.broadcast %cst_9 : f32 to vector<8x1xf32>
    %18 = arith.addf %14, %17 : vector<8x1xf32>
    %19 = math.rsqrt %18 : vector<8x1xf32>
    %20 = vector.broadcast %19 : vector<8x1xf32> to vector<8x32xf32>
    %21 = arith.mulf %16, %20 : vector<8x32xf32>
    %22 = vector.broadcast %2 : vector<1x32xf32> to vector<8x32xf32>
    %23 = arith.mulf %21, %22 : vector<8x32xf32>
    %24 = vector.broadcast %3 : vector<1x32xf32> to vector<8x32xf32>
    %25 = arith.addf %23, %24 : vector<8x32xf32>
    %c1_i32 = arith.constant 1 : i32
    %26 = tpu.dynamic_rotate %25 by %c1_i32 dim 0 : vector<8x32xf32>, i32 -> vector<8x32xf32>
    %27 = tpu.iota {dimensions = array<i32: 0>} : vector<8x1xi32>
    %c8_i32 = arith.constant 8 : i32
    %c0_i32 = arith.constant 0 : i32
    %28 = arith.cmpi eq, %c8_i32, %c0_i32 : i32
    %c1_i32_10 = arith.constant 1 : i32
    %29 = arith.select %28, %c1_i32_10, %c8_i32 : i32
    %30 = vector.broadcast %29 : i32 to vector<8x1xi32>
    %31 = arith.remsi %27, %30 : vector<8x1xi32>
    %c0_i32_11 = arith.constant 0 : i32
    %32 = vector.broadcast %c0_i32_11 : i32 to vector<8x1xi32>
    %33 = arith.cmpi ne, %31, %32 : vector<8x1xi32>
    %c0_i32_12 = arith.constant 0 : i32
    %34 = vector.broadcast %c0_i32_12 : i32 to vector<8x1xi32>
    %35 = arith.cmpi slt, %31, %34 : vector<8x1xi32>
    %c0_i32_13 = arith.constant 0 : i32
    %36 = arith.cmpi slt, %29, %c0_i32_13 : i32
    %37 = vector.broadcast %36 : i1 to vector<8x1xi1>
    %38 = vector.broadcast %37 : vector<8x1xi1> to vector<8x1xi1>
    %39 = arith.xori %35, %38 : vector<8x1xi1>
    %40 = arith.andi %39, %33 : vector<8x1xi1>
    %41 = vector.broadcast %29 : i32 to vector<8x1xi32>
    %42 = arith.addi %31, %41 : vector<8x1xi32>
    %43 = arith.select %40, %42, %31 : vector<8x1xi1>, vector<8x1xi32>
    %c0_i32_14 = arith.constant 0 : i32
    %44 = vector.broadcast %c0_i32_14 : i32 to vector<8x1xi32>
    %45 = arith.cmpi eq, %43, %44 : vector<8x1xi32>
    %46 = tpu.iota {dimensions = array<i32: 1>} : vector<1x32xi32>
    %c16_i32 = arith.constant 16 : i32
    %47 = vector.broadcast %c16_i32 : i32 to vector<1x32xi32>
    %48 = arith.cmpi slt, %46, %47 : vector<1x32xi32>
    %cst_15 = arith.constant 0.000000e+00 : f32
    %49 = vector.shape_cast %45 : vector<8x1xi1> to vector<8x1xi1>
    %50 = vector.broadcast %49 : vector<8x1xi1> to vector<8x32xi1>
    %51 = vector.broadcast %cst_15 : f32 to vector<8x32xf32>
    %52 = arith.select %50, %51, %26 : vector<8x32xi1>, vector<8x32xf32>
    %53 = vector.shape_cast %48 : vector<1x32xi1> to vector<1x32xi1>
    %54 = vector.broadcast %53 : vector<1x32xi1> to vector<8x32xi1>
    %55 = arith.select %54, %52, %25 : vector<8x32xi1>, vector<8x32xf32>
    %56 = arith.truncf %55 : vector<8x32xf32> to vector<8x32xbf16>
    %c0_16 = arith.constant 0 : index
    %c0_17 = arith.constant 0 : index
    %57 = vector.load %arg4[%c0_16, %c0_17] : memref<32x96xbf16, #tpu.memory_space<vmem>>, vector<32x96xbf16>
    %cst_18 = arith.constant dense<0.000000e+00> : vector<8x96xf32>
    %58 = tpu.matmul %56, %57, %cst_18 {dimension_numbers = #tpu.dot_dimension_numbers<[1], [0], [0], [1], [0, 0, 1, 1], [], []>} : vector<8x32xbf16>, vector<32x96xbf16>, vector<8x96xf32> -> vector<8x96xf32>
    %c0_19 = arith.constant 0 : index
    %c0_20 = arith.constant 0 : index
    %59 = vector.load %arg5[%c0_19, %c0_20] : memref<1x96xf32, #tpu.memory_space<vmem>>, vector<1x96xf32>
    %60 = vector.broadcast %59 : vector<1x96xf32> to vector<8x96xf32>
    %61 = arith.addf %58, %60 : vector<8x96xf32>
    %62 = vector.extract_strided_slice %61 {offsets = [0, 0], sizes = [8, 32], strides = [1, 1]} : vector<8x96xf32> to vector<8x32xf32>
    %cst_21 = arith.constant 0.353553385 : f32
    %63 = vector.broadcast %cst_21 : f32 to vector<8x32xf32>
    %64 = arith.mulf %62, %63 : vector<8x32xf32>
    %65 = arith.truncf %64 : vector<8x32xf32> to vector<8x32xbf16>
    %66 = vector.extract_strided_slice %61 {offsets = [0, 32], sizes = [8, 32], strides = [1, 1]} : vector<8x96xf32> to vector<8x32xf32>
    %67 = arith.truncf %66 : vector<8x32xf32> to vector<8x32xbf16>
    %68 = vector.extract_strided_slice %61 {offsets = [0, 64], sizes = [8, 32], strides = [1, 1]} : vector<8x96xf32> to vector<8x32xf32>
    %69 = arith.truncf %68 : vector<8x32xf32> to vector<8x32xbf16>
    %70 = tpu.iota {dimensions = array<i32: 0>} : vector<8x8xi32>
    %71 = tpu.iota {dimensions = array<i32: 1>} : vector<8x8xi32>
    %72 = arith.cmpi sle, %71, %70 : vector<8x8xi32>
    %73 = vector.shape_cast %65 : vector<8x32xbf16> to vector<1x8x32xbf16>
    %74 = vector.shape_cast %67 : vector<8x32xbf16> to vector<1x8x32xbf16>
    %75 = vector.shape_cast %69 : vector<8x32xbf16> to vector<1x8x32xbf16>
    %76 = vector.extract_strided_slice %73 {offsets = [0, 0, 0], sizes = [1, 8, 8], strides = [1, 1, 1]} : vector<1x8x32xbf16> to vector<1x8x8xbf16>
    %77 = vector.extract_strided_slice %74 {offsets = [0, 0, 0], sizes = [1, 8, 8], strides = [1, 1, 1]} : vector<1x8x32xbf16> to vector<1x8x8xbf16>
    "tpu.trace_start"() <{level = 10 : i32, message = "btd,bsd->bts"}> : () -> ()
    %cst_22 = arith.constant dense<0.000000e+00> : vector<1x8x8xf32>
    %78 = tpu.matmul %76, %77, %cst_22 {dimension_numbers = #tpu.dot_dimension_numbers<[2], [2], [1], [1], [0, 0, 0, 1, 1, 1], [0], [0]>} : vector<1x8x8xbf16>, vector<1x8x8xbf16>, vector<1x8x8xf32> -> vector<1x8x8xf32>
    "tpu.trace_stop"() : () -> ()
    %79 = vector.shape_cast %72 : vector<8x8xi1> to vector<1x8x8xi1>
    %cst_23 = arith.constant -1.000000e+30 : f32
    %80 = vector.broadcast %cst_23 : f32 to vector<1x8x8xf32>
    %81 = arith.select %79, %78, %80 : vector<1x8x8xi1>, vector<1x8x8xf32>
    %cst_24 = arith.constant dense<0xFF800000> : vector<1x8xf32>
    %82 = vector.multi_reduction <maximumf>, %81, %cst_24 [2] : vector<1x8x8xf32> to vector<1x8xf32>
    %83 = vector.shape_cast %82 : vector<1x8xf32> to vector<1x8x1xf32>
    %84 = vector.broadcast %83 : vector<1x8x1xf32> to vector<1x8x8xf32>
    %85 = arith.subf %81, %84 : vector<1x8x8xf32>
    %86 = math.exp %85 : vector<1x8x8xf32>
    %cst_25 = arith.constant dense<0.000000e+00> : vector<1x8xf32>
    %87 = vector.multi_reduction <add>, %86, %cst_25 [2] : vector<1x8x8xf32> to vector<1x8xf32>
    %88 = vector.shape_cast %87 : vector<1x8xf32> to vector<1x8x1xf32>
    %89 = tpu.reciprocal %88 {approx = true} : vector<1x8x1xf32> -> vector<1x8x1xf32>
    %90 = vector.broadcast %89 : vector<1x8x1xf32> to vector<1x8x8xf32>
    %91 = arith.mulf %86, %90 : vector<1x8x8xf32>
    %c0_26 = arith.constant 0 : index
    %c0_27 = arith.constant 0 : index
    %c0_28 = arith.constant 0 : index
    %92 = vector.load %arg8[%c0_26, %c0_27, %c0_28] : memref<4x8x8xf32, #tpu.memory_space<vmem>>, vector<1x8x8xf32>
    %93 = vector.shape_cast %92 : vector<1x8x8xf32> to vector<8x8xf32>
    %94 = vector.shape_cast %93 : vector<8x8xf32> to vector<1x8x8xf32>
    %95 = arith.mulf %91, %94 : vector<1x8x8xf32>
    %96 = arith.truncf %95 : vector<1x8x8xf32> to vector<1x8x8xbf16>
    %97 = vector.extract_strided_slice %75 {offsets = [0, 0, 0], sizes = [1, 8, 8], strides = [1, 1, 1]} : vector<1x8x32xbf16> to vector<1x8x8xbf16>
    "tpu.trace_start"() <{level = 10 : i32, message = "bts,bsd->btd"}> : () -> ()
    %cst_29 = arith.constant dense<0.000000e+00> : vector<1x8x8xf32>
    %98 = tpu.matmul %96, %97, %cst_29 {dimension_numbers = #tpu.dot_dimension_numbers<[2], [1], [1], [2], [0, 0, 0, 1, 1, 2], [0], [0]>} : vector<1x8x8xbf16>, vector<1x8x8xbf16>, vector<1x8x8xf32> -> vector<1x8x8xf32>
    "tpu.trace_stop"() : () -> ()
    %99 = vector.extract_strided_slice %73 {offsets = [0, 0, 8], sizes = [1, 8, 8], strides = [1, 1, 1]} : vector<1x8x32xbf16> to vector<1x8x8xbf16>
    %100 = vector.extract_strided_slice %74 {offsets = [0, 0, 8], sizes = [1, 8, 8], strides = [1, 1, 1]} : vector<1x8x32xbf16> to vector<1x8x8xbf16>
    "tpu.trace_start"() <{level = 10 : i32, message = "btd,bsd->bts"}> : () -> ()
    %cst_30 = arith.constant dense<0.000000e+00> : vector<1x8x8xf32>
    %101 = tpu.matmul %99, %100, %cst_30 {dimension_numbers = #tpu.dot_dimension_numbers<[2], [2], [1], [1], [0, 0, 0, 1, 1, 1], [0], [0]>} : vector<1x8x8xbf16>, vector<1x8x8xbf16>, vector<1x8x8xf32> -> vector<1x8x8xf32>
    "tpu.trace_stop"() : () -> ()
    %102 = vector.shape_cast %72 : vector<8x8xi1> to vector<1x8x8xi1>
    %cst_31 = arith.constant -1.000000e+30 : f32
    %103 = vector.broadcast %cst_31 : f32 to vector<1x8x8xf32>
    %104 = arith.select %102, %101, %103 : vector<1x8x8xi1>, vector<1x8x8xf32>
    %cst_32 = arith.constant dense<0xFF800000> : vector<1x8xf32>
    %105 = vector.multi_reduction <maximumf>, %104, %cst_32 [2] : vector<1x8x8xf32> to vector<1x8xf32>
    %106 = vector.shape_cast %105 : vector<1x8xf32> to vector<1x8x1xf32>
    %107 = vector.broadcast %106 : vector<1x8x1xf32> to vector<1x8x8xf32>
    %108 = arith.subf %104, %107 : vector<1x8x8xf32>
    %109 = math.exp %108 : vector<1x8x8xf32>
    %cst_33 = arith.constant dense<0.000000e+00> : vector<1x8xf32>
    %110 = vector.multi_reduction <add>, %109, %cst_33 [2] : vector<1x8x8xf32> to vector<1x8xf32>
    %111 = vector.shape_cast %110 : vector<1x8xf32> to vector<1x8x1xf32>
    %112 = tpu.reciprocal %111 {approx = true} : vector<1x8x1xf32> -> vector<1x8x1xf32>
    %113 = vector.broadcast %112 : vector<1x8x1xf32> to vector<1x8x8xf32>
    %114 = arith.mulf %109, %113 : vector<1x8x8xf32>
    %c1 = arith.constant 1 : index
    %c0_34 = arith.constant 0 : index
    %c0_35 = arith.constant 0 : index
    %115 = vector.load %arg8[%c1, %c0_34, %c0_35] : memref<4x8x8xf32, #tpu.memory_space<vmem>>, vector<1x8x8xf32>
    %116 = vector.shape_cast %115 : vector<1x8x8xf32> to vector<8x8xf32>
    %117 = vector.shape_cast %116 : vector<8x8xf32> to vector<1x8x8xf32>
    %118 = arith.mulf %114, %117 : vector<1x8x8xf32>
    %119 = arith.truncf %118 : vector<1x8x8xf32> to vector<1x8x8xbf16>
    %120 = vector.extract_strided_slice %75 {offsets = [0, 0, 8], sizes = [1, 8, 8], strides = [1, 1, 1]} : vector<1x8x32xbf16> to vector<1x8x8xbf16>
    "tpu.trace_start"() <{level = 10 : i32, message = "bts,bsd->btd"}> : () -> ()
    %cst_36 = arith.constant dense<0.000000e+00> : vector<1x8x8xf32>
    %121 = tpu.matmul %119, %120, %cst_36 {dimension_numbers = #tpu.dot_dimension_numbers<[2], [1], [1], [2], [0, 0, 0, 1, 1, 2], [0], [0]>} : vector<1x8x8xbf16>, vector<1x8x8xbf16>, vector<1x8x8xf32> -> vector<1x8x8xf32>
    "tpu.trace_stop"() : () -> ()
    %122 = vector.extract_strided_slice %73 {offsets = [0, 0, 16], sizes = [1, 8, 8], strides = [1, 1, 1]} : vector<1x8x32xbf16> to vector<1x8x8xbf16>
    %123 = vector.extract_strided_slice %74 {offsets = [0, 0, 16], sizes = [1, 8, 8], strides = [1, 1, 1]} : vector<1x8x32xbf16> to vector<1x8x8xbf16>
    "tpu.trace_start"() <{level = 10 : i32, message = "btd,bsd->bts"}> : () -> ()
    %cst_37 = arith.constant dense<0.000000e+00> : vector<1x8x8xf32>
    %124 = tpu.matmul %122, %123, %cst_37 {dimension_numbers = #tpu.dot_dimension_numbers<[2], [2], [1], [1], [0, 0, 0, 1, 1, 1], [0], [0]>} : vector<1x8x8xbf16>, vector<1x8x8xbf16>, vector<1x8x8xf32> -> vector<1x8x8xf32>
    "tpu.trace_stop"() : () -> ()
    %125 = vector.shape_cast %72 : vector<8x8xi1> to vector<1x8x8xi1>
    %cst_38 = arith.constant -1.000000e+30 : f32
    %126 = vector.broadcast %cst_38 : f32 to vector<1x8x8xf32>
    %127 = arith.select %125, %124, %126 : vector<1x8x8xi1>, vector<1x8x8xf32>
    %cst_39 = arith.constant dense<0xFF800000> : vector<1x8xf32>
    %128 = vector.multi_reduction <maximumf>, %127, %cst_39 [2] : vector<1x8x8xf32> to vector<1x8xf32>
    %129 = vector.shape_cast %128 : vector<1x8xf32> to vector<1x8x1xf32>
    %130 = vector.broadcast %129 : vector<1x8x1xf32> to vector<1x8x8xf32>
    %131 = arith.subf %127, %130 : vector<1x8x8xf32>
    %132 = math.exp %131 : vector<1x8x8xf32>
    %cst_40 = arith.constant dense<0.000000e+00> : vector<1x8xf32>
    %133 = vector.multi_reduction <add>, %132, %cst_40 [2] : vector<1x8x8xf32> to vector<1x8xf32>
    %134 = vector.shape_cast %133 : vector<1x8xf32> to vector<1x8x1xf32>
    %135 = tpu.reciprocal %134 {approx = true} : vector<1x8x1xf32> -> vector<1x8x1xf32>
    %136 = vector.broadcast %135 : vector<1x8x1xf32> to vector<1x8x8xf32>
    %137 = arith.mulf %132, %136 : vector<1x8x8xf32>
    %c2 = arith.constant 2 : index
    %c0_41 = arith.constant 0 : index
    %c0_42 = arith.constant 0 : index
    %138 = vector.load %arg8[%c2, %c0_41, %c0_42] : memref<4x8x8xf32, #tpu.memory_space<vmem>>, vector<1x8x8xf32>
    %139 = vector.shape_cast %138 : vector<1x8x8xf32> to vector<8x8xf32>
    %140 = vector.shape_cast %139 : vector<8x8xf32> to vector<1x8x8xf32>
    %141 = arith.mulf %137, %140 : vector<1x8x8xf32>
    %142 = arith.truncf %141 : vector<1x8x8xf32> to vector<1x8x8xbf16>
    %143 = vector.extract_strided_slice %75 {offsets = [0, 0, 16], sizes = [1, 8, 8], strides = [1, 1, 1]} : vector<1x8x32xbf16> to vector<1x8x8xbf16>
    "tpu.trace_start"() <{level = 10 : i32, message = "bts,bsd->btd"}> : () -> ()
    %cst_43 = arith.constant dense<0.000000e+00> : vector<1x8x8xf32>
    %144 = tpu.matmul %142, %143, %cst_43 {dimension_numbers = #tpu.dot_dimension_numbers<[2], [1], [1], [2], [0, 0, 0, 1, 1, 2], [0], [0]>} : vector<1x8x8xbf16>, vector<1x8x8xbf16>, vector<1x8x8xf32> -> vector<1x8x8xf32>
    "tpu.trace_stop"() : () -> ()
    %145 = vector.extract_strided_slice %73 {offsets = [0, 0, 24], sizes = [1, 8, 8], strides = [1, 1, 1]} : vector<1x8x32xbf16> to vector<1x8x8xbf16>
    %146 = vector.extract_strided_slice %74 {offsets = [0, 0, 24], sizes = [1, 8, 8], strides = [1, 1, 1]} : vector<1x8x32xbf16> to vector<1x8x8xbf16>
    "tpu.trace_start"() <{level = 10 : i32, message = "btd,bsd->bts"}> : () -> ()
    %cst_44 = arith.constant dense<0.000000e+00> : vector<1x8x8xf32>
    %147 = tpu.matmul %145, %146, %cst_44 {dimension_numbers = #tpu.dot_dimension_numbers<[2], [2], [1], [1], [0, 0, 0, 1, 1, 1], [0], [0]>} : vector<1x8x8xbf16>, vector<1x8x8xbf16>, vector<1x8x8xf32> -> vector<1x8x8xf32>
    "tpu.trace_stop"() : () -> ()
    %148 = vector.shape_cast %72 : vector<8x8xi1> to vector<1x8x8xi1>
    %cst_45 = arith.constant -1.000000e+30 : f32
    %149 = vector.broadcast %cst_45 : f32 to vector<1x8x8xf32>
    %150 = arith.select %148, %147, %149 : vector<1x8x8xi1>, vector<1x8x8xf32>
    %cst_46 = arith.constant dense<0xFF800000> : vector<1x8xf32>
    %151 = vector.multi_reduction <maximumf>, %150, %cst_46 [2] : vector<1x8x8xf32> to vector<1x8xf32>
    %152 = vector.shape_cast %151 : vector<1x8xf32> to vector<1x8x1xf32>
    %153 = vector.broadcast %152 : vector<1x8x1xf32> to vector<1x8x8xf32>
    %154 = arith.subf %150, %153 : vector<1x8x8xf32>
    %155 = math.exp %154 : vector<1x8x8xf32>
    %cst_47 = arith.constant dense<0.000000e+00> : vector<1x8xf32>
    %156 = vector.multi_reduction <add>, %155, %cst_47 [2] : vector<1x8x8xf32> to vector<1x8xf32>
    %157 = vector.shape_cast %156 : vector<1x8xf32> to vector<1x8x1xf32>
    %158 = tpu.reciprocal %157 {approx = true} : vector<1x8x1xf32> -> vector<1x8x1xf32>
    %159 = vector.broadcast %158 : vector<1x8x1xf32> to vector<1x8x8xf32>
    %160 = arith.mulf %155, %159 : vector<1x8x8xf32>
    %c3 = arith.constant 3 : index
    %c0_48 = arith.constant 0 : index
    %c0_49 = arith.constant 0 : index
    %161 = vector.load %arg8[%c3, %c0_48, %c0_49] : memref<4x8x8xf32, #tpu.memory_space<vmem>>, vector<1x8x8xf32>
    %162 = vector.shape_cast %161 : vector<1x8x8xf32> to vector<8x8xf32>
    %163 = vector.shape_cast %162 : vector<8x8xf32> to vector<1x8x8xf32>
    %164 = arith.mulf %160, %163 : vector<1x8x8xf32>
    %165 = arith.truncf %164 : vector<1x8x8xf32> to vector<1x8x8xbf16>
    %166 = vector.extract_strided_slice %75 {offsets = [0, 0, 24], sizes = [1, 8, 8], strides = [1, 1, 1]} : vector<1x8x32xbf16> to vector<1x8x8xbf16>
    "tpu.trace_start"() <{level = 10 : i32, message = "bts,bsd->btd"}> : () -> ()
    %cst_50 = arith.constant dense<0.000000e+00> : vector<1x8x8xf32>
    %167 = tpu.matmul %165, %166, %cst_50 {dimension_numbers = #tpu.dot_dimension_numbers<[2], [1], [1], [2], [0, 0, 0, 1, 1, 2], [0], [0]>} : vector<1x8x8xbf16>, vector<1x8x8xbf16>, vector<1x8x8xf32> -> vector<1x8x8xf32>
    "tpu.trace_stop"() : () -> ()
    %168 = tpu.concatenate %98, %121, %144, %167 in 2 : vector<1x8x8xf32>, vector<1x8x8xf32>, vector<1x8x8xf32>, vector<1x8x8xf32> -> vector<1x8x32xf32>
    %169 = vector.shape_cast %168 : vector<1x8x32xf32> to vector<8x32xf32>
    %170 = arith.truncf %169 : vector<8x32xf32> to vector<8x32xbf16>
    %c0_51 = arith.constant 0 : index
    %c0_52 = arith.constant 0 : index
    %171 = vector.load %arg6[%c0_51, %c0_52] : memref<32x32xbf16, #tpu.memory_space<vmem>>, vector<32x32xbf16>
    %cst_53 = arith.constant dense<0.000000e+00> : vector<8x32xf32>
    %172 = tpu.matmul %170, %171, %cst_53 {dimension_numbers = #tpu.dot_dimension_numbers<[1], [0], [0], [1], [0, 0, 1, 1], [], []>} : vector<8x32xbf16>, vector<32x32xbf16>, vector<8x32xf32> -> vector<8x32xf32>
    %c0_54 = arith.constant 0 : index
    %c0_55 = arith.constant 0 : index
    %173 = vector.load %arg7[%c0_54, %c0_55] : memref<1x32xf32, #tpu.memory_space<vmem>>, vector<1x32xf32>
    %174 = vector.broadcast %173 : vector<1x32xf32> to vector<8x32xf32>
    %175 = arith.addf %172, %174 : vector<8x32xf32>
    %176 = arith.addf %1, %175 : vector<8x32xf32>
    %c0_56 = arith.constant 0 : index
    %c0_57 = arith.constant 0 : index
    %177 = vector.load %arg9[%c0_56, %c0_57] : memref<1x32xf32, #tpu.memory_space<vmem>>, vector<1x32xf32>
    %c0_58 = arith.constant 0 : index
    %c0_59 = arith.constant 0 : index
    %178 = vector.load %arg10[%c0_58, %c0_59] : memref<1x32xf32, #tpu.memory_space<vmem>>, vector<1x32xf32>
    %cst_60 = arith.constant dense<0.000000e+00> : vector<8xf32>
    %179 = vector.multi_reduction <add>, %176, %cst_60 [1] : vector<8x32xf32> to vector<8xf32>
    %180 = vector.shape_cast %179 : vector<8xf32> to vector<8x1xf32>
    %cst_61 = arith.constant 3.200000e+01 : f32
    %181 = vector.broadcast %cst_61 : f32 to vector<8x1xf32>
    %182 = arith.divf %180, %181 : vector<8x1xf32>
    %183 = arith.mulf %176, %176 : vector<8x32xf32>
    %cst_62 = arith.constant dense<0.000000e+00> : vector<8xf32>
    %184 = vector.multi_reduction <add>, %183, %cst_62 [1] : vector<8x32xf32> to vector<8xf32>
    %185 = vector.shape_cast %184 : vector<8xf32> to vector<8x1xf32>
    %cst_63 = arith.constant 3.200000e+01 : f32
    %186 = vector.broadcast %cst_63 : f32 to vector<8x1xf32>
    %187 = arith.divf %185, %186 : vector<8x1xf32>
    %188 = arith.mulf %182, %182 : vector<8x1xf32>
    %189 = arith.subf %187, %188 : vector<8x1xf32>
    %190 = vector.broadcast %182 : vector<8x1xf32> to vector<8x32xf32>
    %191 = arith.subf %176, %190 : vector<8x32xf32>
    %cst_64 = arith.constant 9.99999974E-6 : f32
    %192 = vector.broadcast %cst_64 : f32 to vector<8x1xf32>
    %193 = arith.addf %189, %192 : vector<8x1xf32>
    %194 = math.rsqrt %193 : vector<8x1xf32>
    %195 = vector.broadcast %194 : vector<8x1xf32> to vector<8x32xf32>
    %196 = arith.mulf %191, %195 : vector<8x32xf32>
    %197 = vector.broadcast %177 : vector<1x32xf32> to vector<8x32xf32>
    %198 = arith.mulf %196, %197 : vector<8x32xf32>
    %199 = vector.broadcast %178 : vector<1x32xf32> to vector<8x32xf32>
    %200 = arith.addf %198, %199 : vector<8x32xf32>
    %201 = arith.truncf %200 : vector<8x32xf32> to vector<8x32xbf16>
    %c0_65 = arith.constant 0 : index
    %c0_66 = arith.constant 0 : index
    %202 = vector.load %arg11[%c0_65, %c0_66] : memref<32x128xbf16, #tpu.memory_space<vmem>>, vector<32x128xbf16>
    %cst_67 = arith.constant dense<0.000000e+00> : vector<8x128xf32>
    %203 = tpu.matmul %201, %202, %cst_67 {dimension_numbers = #tpu.dot_dimension_numbers<[1], [0], [0], [1], [0, 0, 1, 1], [], []>} : vector<8x32xbf16>, vector<32x128xbf16>, vector<8x128xf32> -> vector<8x128xf32>
    %c0_68 = arith.constant 0 : index
    %c0_69 = arith.constant 0 : index
    %204 = vector.load %arg12[%c0_68, %c0_69] : memref<1x128xf32, #tpu.memory_space<vmem>>, vector<1x128xf32>
    %205 = vector.broadcast %204 : vector<1x128xf32> to vector<8x128xf32>
    %206 = arith.addf %203, %205 : vector<8x128xf32>
    %cst_70 = arith.constant 5.000000e-01 : f32
    %207 = vector.broadcast %cst_70 : f32 to vector<8x128xf32>
    %208 = arith.mulf %207, %206 : vector<8x128xf32>
    %cst_71 = arith.constant 0.707106769 : f32
    %209 = vector.broadcast %cst_71 : f32 to vector<8x128xf32>
    %210 = arith.mulf %206, %209 : vector<8x128xf32>
    %211 = math.erf %210 : vector<8x128xf32>
    %cst_72 = arith.constant 1.000000e+00 : f32
    %212 = vector.broadcast %cst_72 : f32 to vector<8x128xf32>
    %213 = arith.addf %212, %211 : vector<8x128xf32>
    %214 = arith.mulf %208, %213 : vector<8x128xf32>
    %215 = arith.truncf %214 : vector<8x128xf32> to vector<8x128xbf16>
    %c0_73 = arith.constant 0 : index
    %c0_74 = arith.constant 0 : index
    %216 = vector.load %arg13[%c0_73, %c0_74] : memref<128x32xbf16, #tpu.memory_space<vmem>>, vector<128x32xbf16>
    %cst_75 = arith.constant dense<0.000000e+00> : vector<8x32xf32>
    %217 = tpu.matmul %215, %216, %cst_75 {dimension_numbers = #tpu.dot_dimension_numbers<[1], [0], [0], [1], [0, 0, 1, 1], [], []>} : vector<8x128xbf16>, vector<128x32xbf16>, vector<8x32xf32> -> vector<8x32xf32>
    %c0_76 = arith.constant 0 : index
    %c0_77 = arith.constant 0 : index
    %218 = vector.load %arg14[%c0_76, %c0_77] : memref<1x32xf32, #tpu.memory_space<vmem>>, vector<1x32xf32>
    %219 = vector.broadcast %218 : vector<1x32xf32> to vector<8x32xf32>
    %220 = arith.addf %217, %219 : vector<8x32xf32>
    %221 = arith.addf %176, %220 : vector<8x32xf32>
    %222 = vector.shape_cast %221 : vector<8x32xf32> to vector<1x8x32xf32>
    %c0_78 = arith.constant 0 : index
    %c0_79 = arith.constant 0 : index
    %c0_80 = arith.constant 0 : index
    %223 = vector.load %arg15[%c0_78, %c0_79, %c0_80] : memref<1x8x32xf32, #tpu.memory_space<vmem>>, vector<1x8x32xf32>
    tpu.vector_store %arg15[%c0_78, %c0_79, %c0_80], %222 {strides = array<i32>} : memref<1x8x32xf32, #tpu.memory_space<vmem>>, vector<1x8x32xf32>,
    return
  }
  func.func @transform_0(%arg0: i32) -> (i32, i32, i32) {
    %c0_i32 = arith.constant 0 : i32
    %c0_i32_0 = arith.constant 0 : i32
    %c0_i32_1 = arith.constant 0 : i32
    return %arg0, %c0_i32, %c0_i32_0 : i32, i32, i32
  }
  func.func @transform_1(%arg0: i32) -> (i32, i32) {
    %c0_i32 = arith.constant 0 : i32
    %c0_i32_0 = arith.constant 0 : i32
    %c0_i32_1 = arith.constant 0 : i32
    return %c0_i32, %c0_i32_0 : i32, i32
  }
  func.func @transform_2(%arg0: i32) -> (i32, i32) {
    %c0_i32 = arith.constant 0 : i32
    %c0_i32_0 = arith.constant 0 : i32
    %c0_i32_1 = arith.constant 0 : i32
    return %c0_i32, %c0_i32_0 : i32, i32
  }
  func.func @transform_3(%arg0: i32) -> (i32, i32) {
    %c0_i32 = arith.constant 0 : i32
    %c0_i32_0 = arith.constant 0 : i32
    %c0_i32_1 = arith.constant 0 : i32
    return %c0_i32, %c0_i32_0 : i32, i32
  }
  func.func @transform_4(%arg0: i32) -> (i32, i32) {
    %c0_i32 = arith.constant 0 : i32
    %c0_i32_0 = arith.constant 0 : i32
    %c0_i32_1 = arith.constant 0 : i32
    return %c0_i32, %c0_i32_0 : i32, i32
  }
  func.func @transform_5(%arg0: i32) -> (i32, i32) {
    %c0_i32 = arith.constant 0 : i32
    %c0_i32_0 = arith.constant 0 : i32
    %c0_i32_1 = arith.constant 0 : i32
    return %c0_i32, %c0_i32_0 : i32, i32
  }
  func.func @transform_6(%arg0: i32) -> (i32, i32) {
    %c0_i32 = arith.constant 0 : i32
    %c0_i32_0 = arith.constant 0 : i32
    %c0_i32_1 = arith.constant 0 : i32
    return %c0_i32, %c0_i32_0 : i32, i32
  }
  func.func @transform_7(%arg0: i32) -> (i32, i32, i32) {
    %c0_i32 = arith.constant 0 : i32
    %c0_i32_0 = arith.constant 0 : i32
    %c0_i32_1 = arith.constant 0 : i32
    %c0_i32_2 = arith.constant 0 : i32
    return %c0_i32, %c0_i32_0, %c0_i32_1 : i32, i32, i32
  }
  func.func @transform_8(%arg0: i32) -> (i32, i32) {
    %c0_i32 = arith.constant 0 : i32
    %c0_i32_0 = arith.constant 0 : i32
    %c0_i32_1 = arith.constant 0 : i32
    return %c0_i32, %c0_i32_0 : i32, i32
  }
  func.func @transform_9(%arg0: i32) -> (i32, i32) {
    %c0_i32 = arith.constant 0 : i32
    %c0_i32_0 = arith.constant 0 : i32
    %c0_i32_1 = arith.constant 0 : i32
    return %c0_i32, %c0_i32_0 : i32, i32
  }
  func.func @transform_10(%arg0: i32) -> (i32, i32) {
    %c0_i32 = arith.constant 0 : i32
    %c0_i32_0 = arith.constant 0 : i32
    %c0_i32_1 = arith.constant 0 : i32
    return %c0_i32, %c0_i32_0 : i32, i32
  }
  func.func @transform_11(%arg0: i32) -> (i32, i32) {
    %c0_i32 = arith.constant 0 : i32
    %c0_i32_0 = arith.constant 0 : i32
    %c0_i32_1 = arith.constant 0 : i32
    return %c0_i32, %c0_i32_0 : i32, i32
  }
  func.func @transform_12(%arg0: i32) -> (i32, i32) {
    %c0_i32 = arith.constant 0 : i32
    %c0_i32_0 = arith.constant 0 : i32
    %c0_i32_1 = arith.constant 0 : i32
    return %c0_i32, %c0_i32_0 : i32, i32
  }
  func.func @transform_13(%arg0: i32) -> (i32, i32) {
    %c0_i32 = arith.constant 0 : i32
    %c0_i32_0 = arith.constant 0 : i32
    %c0_i32_1 = arith.constant 0 : i32
    return %c0_i32, %c0_i32_0 : i32, i32
  }
  func.func @transform_14(%arg0: i32) -> (i32, i32, i32) {
    %c0_i32 = arith.constant 0 : i32
    %c0_i32_0 = arith.constant 0 : i32
    %c0_i32_1 = arith.constant 0 : i32
    return %arg0, %c0_i32, %c0_i32_0 : i32, i32, i32
  }
}

</mosaic_0001>

<llo_original>
// kernel: tpu_custom_call.1
$region0: #{tpu_custom_call.1}
  #allocation0 [shape = 'u32[]', space=smem, size = 0x4, offset = 0x4, fixed_abs, tag = 'smem constant byte address 0x4 - core index']
  #allocation1 [shape = 'u32[144,128]{1,0:T(1,128)}', space=vmem, size = 0x12000, scoped, tag = 'internal scratch']
  %s0 = inlined_call_operand.vmem [shape: f32[2,8,32], index: 0, kind: input, shape index: {}]
  %s1 = inlined_call_operand.vmem [shape: f32[1,32], index: 1, kind: input, shape index: {}]
  %s2 = inlined_call_operand.vmem [shape: f32[1,32], index: 2, kind: input, shape index: {}]
  %s3 = inlined_call_operand.vmem [shape: bf16[32,96], index: 3, kind: input, shape index: {}]
  %s4 = inlined_call_operand.hbm [shape: f32[1,96], index: 4, kind: input, shape index: {}]
  %s5 = inlined_call_operand.vmem [shape: bf16[32,32], index: 5, kind: input, shape index: {}]
  %s6 = inlined_call_operand.hbm [shape: f32[1,32], index: 6, kind: input, shape index: {}]
  %s7 = inlined_call_operand.vmem [shape: f32[4,8,8], index: 7, kind: input, shape index: {}]
  %s8 = inlined_call_operand.hbm [shape: f32[1,32], index: 8, kind: input, shape index: {}]
  %s9 = inlined_call_operand.hbm [shape: f32[1,32], index: 9, kind: input, shape index: {}]
  %s10 = inlined_call_operand.vmem [shape: bf16[32,128], index: 10, kind: input, shape index: {}]
  %s11 = inlined_call_operand.vmem [shape: f32[1,128], index: 11, kind: input, shape index: {}]
  %s12 = inlined_call_operand.vmem [shape: bf16[128,32], index: 12, kind: input, shape index: {}]
  %s13 = inlined_call_operand.vmem [shape: f32[1,32], index: 13, kind: input, shape index: {}]
  %s14 = inlined_call_operand.hbm [shape: f32[2,8,32], index: 14, kind: output, shape index: {}]
  %s15 = sld [smem:[#allocation0]]
  $region105: #{tpu_custom_call.1} parent=0
    _
  %s17 = ssub.s32 1, %s15
  %s18 = scalar_select 0, %s17, %s15
  $region1: #{tpu_custom_call.1} parent=0
    #allocation2 [shape = 'u8[512]{0}', space=vmem, size = 0x400, scoped, tag = 'input window, operand 4, single buffered']
    #allocation3 [shape = 's32[2]{0}', space=sflag, size = 0x8, scoped, tag = 'scoped memory for tpu_custom_call.1']
    #allocation4 [shape = 's32[2]{0}', space=sflag, size = 0x8, scoped, tag = 'scoped memory for tpu_custom_call.1']
    #allocation5 [shape = 'u8[512]{0}', space=vmem, size = 0x400, scoped, tag = 'input window, operand 6, single buffered']
    #allocation6 [shape = 's32[1]{0}', space=sflag, size = 0x4, scoped, tag = 'scoped memory for tpu_custom_call.1']
    #allocation7 [shape = 'u8[512]{0}', space=vmem, size = 0x400, scoped, tag = 'input window, operand 8, single buffered']
    #allocation8 [shape = 'u8[512]{0}', space=vmem, size = 0x400, scoped, tag = 'input window, operand 9, single buffered']
    #allocation9 [shape = 's32[1]{0}', space=sflag, size = 0x4, scoped, tag = 'scoped memory for tpu_custom_call.1']
    #allocation10 [shape = 'u8[8192]{0}', space=vmem, size = 0x2000, scoped, tag = 'output window, operand 0']
    %19 = vsyncpa [#allocation3], 0
    %20 = vsyncpa [#allocation6], 0
    %21 = vsyncpa [#allocation9], 0
    %22 = vsyncpa [#allocation4], 0
    %s23 = scalar_lea.sflag [#allocation4], 1
    %24 = vsyncpa %s23, 0
    loop: start=0, step=1, limit=4
    $region2: #{tpu_custom_call.1} parent=1 // loop_pre_header
      _
    $region3: #{tpu_custom_call.1} parent=1 // loop_header
      %s26 = sphi 0, %s30
      %p27 = scmp.ge.s32.totalorder %s26, 4
      %s36 = sphi 0, %s38
      %s39 = sphi 0, %s36
      %s40 = sphi 0, %s39
      %s56 = sphi 0, %s40
      %s60 = sphi 0, %s60
      %s62 = sphi 0, %s60
      %s63 = sphi 0, %s62
      %s77 = sphi 0, %s63
      %s81 = sphi 0, %s81
      %s83 = sphi 0, %s81
      %s84 = sphi 0, %s83
      %s98 = sphi 0, %s84
      %s102 = sphi 0, %s102
      %s104 = sphi 0, %s102
      %s105 = sphi 0, %s104
      %s119 = sphi 0, %s105
      %s123 = sphi 0, %s123
      %s125 = sphi 0, %s123
      %s126 = sphi 0, %s125
      %s140 = sphi 0, %s126
      %s144 = sphi 0, %s144
      %s146 = sphi 0, %s144
      %s147 = sphi 0, %s146
      %s161 = sphi 0, %s147
      %s165 = sphi 0, %s165
      %s167 = sphi 0, %s165
      %s168 = sphi 0, %s167
      %s182 = sphi 0, %s168
      %s186 = sphi 0, %s186
      %s188 = sphi 0, %s186
      %s189 = sphi 0, %s188
      %s203 = sphi 0, %s189
      %s207 = sphi 0, %s207
      %s209 = sphi 0, %s207
      %s210 = sphi 0, %s209
      %s224 = sphi 0, %s210
      %s228 = sphi 0, %s228
      %s230 = sphi 0, %s228
      %s231 = sphi 0, %s230
      %s245 = sphi 0, %s231
      %s249 = sphi 0, %s249
      %s251 = sphi 0, %s249
      %s252 = sphi 0, %s251
      %s266 = sphi 0, %s252
      %s270 = sphi 0, %s270
      %s272 = sphi 0, %s270
      %s273 = sphi 0, %s272
      %s287 = sphi 0, %s273
      %s291 = sphi 0, %s291
      %s293 = sphi 0, %s291
      %s294 = sphi 0, %s293
      %s308 = sphi 0, %s294
      %s312 = sphi 0, %s312
      %s314 = sphi 0, %s312
      %s315 = sphi 0, %s314
      %s329 = sphi 0, %s315
      %s335 = sphi 0, %s337
      %s338 = sphi 0, %s335
      %s339 = sphi 0, %s338
      %s355 = sphi 0, %s339
    $region4: #{tpu_custom_call.1} parent=1 // loop_header_branch
      %29 = sbr.rel (%p27) target = $region8
    $region5: #{tpu_custom_call.1} parent=1 // loop_body
      %s31 = ssub.s32 %s26, 1
      %s32 = ssub.s32 %s26, 2
      %s33 = sadd.s32 %s26, 1
      %s34 = ssub.s32 %s26, %s33
      %p35 = scmp.eq.s32.totalorder %s34, 0
      %s37 = sadd.s32 %s36, 1
      %s38 = scalar_select %p35, %s36, %s37
      %p41 = pneg %p35
      %p42 = scmp.eq.s32.totalorder %s26, 1
      %p43 = por %p41, %p42
      %p44 = scmp.ne.s32.totalorder %s36, %s39
      %p45 = scmp.eq.s32.totalorder %s26, 0
      %p46 = por %p44, %p45
      %p47 = scmp.ne.s32.totalorder %s36, %s39
      %p48 = scmp.eq.s32.totalorder %s31, 1
      %p49 = por %p47, %p48
      %p50 = scmp.ne.s32.totalorder %s39, %s40
      %p51 = scmp.eq.s32.totalorder %s31, 0
      %p52 = por %p50, %p51
      %p53 = scmp.ne.s32.totalorder %s39, %s40
      %p54 = scmp.eq.s32.totalorder %s32, 1
      %p55 = por %p53, %p54
      %p57 = scmp.ne.s32.totalorder %s40, %s56
      %p58 = scmp.eq.s32.totalorder %s32, 0
      %p59 = por %p57, %p58
      %s61 = sadd.s32 %s60, 1
      %p64 = scmp.eq.s32.totalorder %s26, 1
      %p65 = scmp.ne.s32.totalorder %s60, %s62
      %p66 = scmp.eq.s32.totalorder %s26, 0
      %p67 = por %p65, %p66
      %p68 = scmp.ne.s32.totalorder %s60, %s62
      %p69 = scmp.eq.s32.totalorder %s31, 1
      %p70 = por %p68, %p69
      %p71 = scmp.ne.s32.totalorder %s62, %s63
      %p72 = scmp.eq.s32.totalorder %s31, 0
      %p73 = por %p71, %p72
      %p74 = scmp.ne.s32.totalorder %s62, %s63
      %p75 = scmp.eq.s32.totalorder %s32, 1
      %p76 = por %p74, %p75
      %p78 = scmp.ne.s32.totalorder %s63, %s77
      %p79 = scmp.eq.s32.totalorder %s32, 0
      %p80 = por %p78, %p79
      %s82 = sadd.s32 %s81, 1
      %p85 = scmp.eq.s32.totalorder %s26, 1
      %p86 = scmp.ne.s32.totalorder %s81, %s83
      %p87 = scmp.eq.s32.totalorder %s26, 0
      %p88 = por %p86, %p87
      %p89 = scmp.ne.s32.totalorder %s81, %s83
      %p90 = scmp.eq.s32.totalorder %s31, 1
      %p91 = por %p89, %p90
      %p92 = scmp.ne.s32.totalorder %s83, %s84
      %p93 = scmp.eq.s32.totalorder %s31, 0
      %p94 = por %p92, %p93
      %p95 = scmp.ne.s32.totalorder %s83, %s84
      %p96 = scmp.eq.s32.totalorder %s32, 1
      %p97 = por %p95, %p96
      %p99 = scmp.ne.s32.totalorder %s84, %s98
      %p100 = scmp.eq.s32.totalorder %s32, 0
      %p101 = por %p99, %p100
      %s103 = sadd.s32 %s102, 1
      %p106 = scmp.eq.s32.totalorder %s26, 1
      %p107 = scmp.ne.s32.totalorder %s102, %s104
      %p108 = scmp.eq.s32.totalorder %s26, 0
      %p109 = por %p107, %p108
      %p110 = scmp.ne.s32.totalorder %s102, %s104
      %p111 = scmp.eq.s32.totalorder %s31, 1
      %p112 = por %p110, %p111
      %p113 = scmp.ne.s32.totalorder %s104, %s105
      %p114 = scmp.eq.s32.totalorder %s31, 0
      %p115 = por %p113, %p114
      %p116 = scmp.ne.s32.totalorder %s104, %s105
      %p117 = scmp.eq.s32.totalorder %s32, 1
      %p118 = por %p116, %p117
      %p120 = scmp.ne.s32.totalorder %s105, %s119
      %p121 = scmp.eq.s32.totalorder %s32, 0
      %p122 = por %p120, %p121
      %s124 = sadd.s32 %s123, 1
      %p127 = scmp.eq.s32.totalorder %s26, 1
      %p128 = scmp.ne.s32.totalorder %s123, %s125
      %p129 = scmp.eq.s32.totalorder %s26, 0
      %p130 = por %p128, %p129
      %p131 = scmp.ne.s32.totalorder %s123, %s125
      %p132 = scmp.eq.s32.totalorder %s31, 1
      %p133 = por %p131, %p132
      %p134 = scmp.ne.s32.totalorder %s125, %s126
      %p135 = scmp.eq.s32.totalorder %s31, 0
      %p136 = por %p134, %p135
      %p137 = scmp.ne.s32.totalorder %s125, %s126
      %p138 = scmp.eq.s32.totalorder %s32, 1
      %p139 = por %p137, %p138
      %p141 = scmp.ne.s32.totalorder %s126, %s140
      %p142 = scmp.eq.s32.totalorder %s32, 0
      %p143 = por %p141, %p142
      %s145 = sadd.s32 %s144, 1
      %p148 = scmp.eq.s32.totalorder %s26, 1
      %p149 = scmp.ne.s32.totalorder %s144, %s146
      %p150 = scmp.eq.s32.totalorder %s26, 0
      %p151 = por %p149, %p150
      %p152 = scmp.ne.s32.totalorder %s144, %s146
      %p153 = scmp.eq.s32.totalorder %s31, 1
      %p154 = por %p152, %p153
      %p155 = scmp.ne.s32.totalorder %s146, %s147
      %p156 = scmp.eq.s32.totalorder %s31, 0
      %p157 = por %p155, %p156
      %p158 = scmp.ne.s32.totalorder %s146, %s147
      %p159 = scmp.eq.s32.totalorder %s32, 1
      %p160 = por %p158, %p159
      %p162 = scmp.ne.s32.totalorder %s147, %s161
      %p163 = scmp.eq.s32.totalorder %s32, 0
      %p164 = por %p162, %p163
      %s166 = sadd.s32 %s165, 1
      %p169 = scmp.eq.s32.totalorder %s26, 1
      %p170 = scmp.ne.s32.totalorder %s165, %s167
      %p171 = scmp.eq.s32.totalorder %s26, 0
      %p172 = por %p170, %p171
      %p173 = scmp.ne.s32.totalorder %s165, %s167
      %p174 = scmp.eq.s32.totalorder %s31, 1
      %p175 = por %p173, %p174
      %p176 = scmp.ne.s32.totalorder %s167, %s168
      %p177 = scmp.eq.s32.totalorder %s31, 0
      %p178 = por %p176, %p177
      %p179 = scmp.ne.s32.totalorder %s167, %s168
      %p180 = scmp.eq.s32.totalorder %s32, 1
      %p181 = por %p179, %p180
      %p183 = scmp.ne.s32.totalorder %s168, %s182
      %p184 = scmp.eq.s32.totalorder %s32, 0
      %p185 = por %p183, %p184
      %s187 = sadd.s32 %s186, 1
      %p190 = scmp.eq.s32.totalorder %s26, 1
      %p191 = scmp.ne.s32.totalorder %s186, %s188
      %p192 = scmp.eq.s32.totalorder %s26, 0
      %p193 = por %p191, %p192
      %p194 = scmp.ne.s32.totalorder %s186, %s188
      %p195 = scmp.eq.s32.totalorder %s31, 1
      %p196 = por %p194, %p195
      %p197 = scmp.ne.s32.totalorder %s188, %s189
      %p198 = scmp.eq.s32.totalorder %s31, 0
      %p199 = por %p197, %p198
      %p200 = scmp.ne.s32.totalorder %s188, %s189
      %p201 = scmp.eq.s32.totalorder %s32, 1
      %p202 = por %p200, %p201
      %p204 = scmp.ne.s32.totalorder %s189, %s203
      %p205 = scmp.eq.s32.totalorder %s32, 0
      %p206 = por %p204, %p205
      %s208 = sadd.s32 %s207, 1
      %p211 = scmp.eq.s32.totalorder %s26, 1
      %p212 = scmp.ne.s32.totalorder %s207, %s209
      %p213 = scmp.eq.s32.totalorder %s26, 0
      %p214 = por %p212, %p213
      %p215 = scmp.ne.s32.totalorder %s207, %s209
      %p216 = scmp.eq.s32.totalorder %s31, 1
      %p217 = por %p215, %p216
      %p218 = scmp.ne.s32.totalorder %s209, %s210
      %p219 = scmp.eq.s32.totalorder %s31, 0
      %p220 = por %p218, %p219
      %p221 = scmp.ne.s32.totalorder %s209, %s210
      %p222 = scmp.eq.s32.totalorder %s32, 1
      %p223 = por %p221, %p222
      %p225 = scmp.ne.s32.totalorder %s210, %s224
      %p226 = scmp.eq.s32.totalorder %s32, 0
      %p227 = por %p225, %p226
      %s229 = sadd.s32 %s228, 1
      %p232 = scmp.eq.s32.totalorder %s26, 1
      %p233 = scmp.ne.s32.totalorder %s228, %s230
      %p234 = scmp.eq.s32.totalorder %s26, 0
      %p235 = por %p233, %p234
      %p236 = scmp.ne.s32.totalorder %s228, %s230
      %p237 = scmp.eq.s32.totalorder %s31, 1
      %p238 = por %p236, %p237
      %p239 = scmp.ne.s32.totalorder %s230, %s231
      %p240 = scmp.eq.s32.totalorder %s31, 0
      %p241 = por %p239, %p240
      %p242 = scmp.ne.s32.totalorder %s230, %s231
      %p243 = scmp.eq.s32.totalorder %s32, 1
      %p244 = por %p242, %p243
      %p246 = scmp.ne.s32.totalorder %s231, %s245
      %p247 = scmp.eq.s32.totalorder %s32, 0
      %p248 = por %p246, %p247
      %s250 = sadd.s32 %s249, 1
      %p253 = scmp.eq.s32.totalorder %s26, 1
      %p254 = scmp.ne.s32.totalorder %s249, %s251
      %p255 = scmp.eq.s32.totalorder %s26, 0
      %p256 = por %p254, %p255
      %p257 = scmp.ne.s32.totalorder %s249, %s251
      %p258 = scmp.eq.s32.totalorder %s31, 1
      %p259 = por %p257, %p258
      %p260 = scmp.ne.s32.totalorder %s251, %s252
      %p261 = scmp.eq.s32.totalorder %s31, 0
      %p262 = por %p260, %p261
      %p263 = scmp.ne.s32.totalorder %s251, %s252
      %p264 = scmp.eq.s32.totalorder %s32, 1
      %p265 = por %p263, %p264
      %p267 = scmp.ne.s32.totalorder %s252, %s266
      %p268 = scmp.eq.s32.totalorder %s32, 0
      %p269 = por %p267, %p268
      %s271 = sadd.s32 %s270, 1
      %p274 = scmp.eq.s32.totalorder %s26, 1
      %p275 = scmp.ne.s32.totalorder %s270, %s272
      %p276 = scmp.eq.s32.totalorder %s26, 0
      %p277 = por %p275, %p276
      %p278 = scmp.ne.s32.totalorder %s270, %s272
      %p279 = scmp.eq.s32.totalorder %s31, 1
      %p280 = por %p278, %p279
      %p281 = scmp.ne.s32.totalorder %s272, %s273
      %p282 = scmp.eq.s32.totalorder %s31, 0
      %p283 = por %p281, %p282
      %p284 = scmp.ne.s32.totalorder %s272, %s273
      %p285 = scmp.eq.s32.totalorder %s32, 1
      %p286 = por %p284, %p285
      %p288 = scmp.ne.s32.totalorder %s273, %s287
      %p289 = scmp.eq.s32.totalorder %s32, 0
      %p290 = por %p288, %p289
      %s292 = sadd.s32 %s291, 1
      %p295 = scmp.eq.s32.totalorder %s26, 1
      %p296 = scmp.ne.s32.totalorder %s291, %s293
      %p297 = scmp.eq.s32.totalorder %s26, 0
      %p298 = por %p296, %p297
      %p299 = scmp.ne.s32.totalorder %s291, %s293
      %p300 = scmp.eq.s32.totalorder %s31, 1
      %p301 = por %p299, %p300
      %p302 = scmp.ne.s32.totalorder %s293, %s294
      %p303 = scmp.eq.s32.totalorder %s31, 0
      %p304 = por %p302, %p303
      %p305 = scmp.ne.s32.totalorder %s293, %s294
      %p306 = scmp.eq.s32.totalorder %s32, 1
      %p307 = por %p305, %p306
      %p309 = scmp.ne.s32.totalorder %s294, %s308
      %p310 = scmp.eq.s32.totalorder %s32, 0
      %p311 = por %p309, %p310
      %s313 = sadd.s32 %s312, 1
      %p316 = scmp.eq.s32.totalorder %s26, 1
      %p317 = scmp.ne.s32.totalorder %s312, %s314
      %p318 = scmp.eq.s32.totalorder %s26, 0
      %p319 = por %p317, %p318
      %p320 = scmp.ne.s32.totalorder %s312, %s314
      %p321 = scmp.eq.s32.totalorder %s31, 1
      %p322 = por %p320, %p321
      %p323 = scmp.ne.s32.totalorder %s314, %s315
      %p324 = scmp.eq.s32.totalorder %s31, 0
      %p325 = por %p323, %p324
      %p326 = scmp.ne.s32.totalorder %s314, %s315
      %p327 = scmp.eq.s32.totalorder %s32, 1
      %p328 = por %p326, %p327
      %p330 = scmp.ne.s32.totalorder %s315, %s329
      %p331 = scmp.eq.s32.totalorder %s32, 0
      %p332 = por %p330, %p331
      %s333 = ssub.s32 %s26, %s33
      %p334 = scmp.eq.s32.totalorder %s333, 0
      %s336 = sadd.s32 %s335, 1
      %s337 = scalar_select %p334, %s335, %s336
      %p340 = pneg %p334
      %p341 = scmp.eq.s32.totalorder %s26, 1
      %p342 = por %p340, %p341
      %p343 = scmp.ne.s32.totalorder %s335, %s338
      %p344 = scmp.eq.s32.totalorder %s26, 0
      %p345 = por %p343, %p344
      %p346 = scmp.ne.s32.totalorder %s335, %s338
      %p347 = scmp.eq.s32.totalorder %s31, 1
      %p348 = por %p346, %p347
      %p349 = scmp.ne.s32.totalorder %s338, %s339
      %p350 = scmp.eq.s32.totalorder %s31, 0
      %p351 = por %p349, %p350
      %p352 = scmp.ne.s32.totalorder %s338, %s339
      %p353 = scmp.eq.s32.totalorder %s32, 1
      %p354 = por %p352, %p353
      %p356 = scmp.ne.s32.totalorder %s339, %s355
      %p357 = scmp.eq.s32.totalorder %s32, 0
      %p358 = por %p356, %p357
      %p359 = scmp.le.s32.totalorder 1, %s26
      %p360 = scmp.lt.s32.totalorder %s26, 3
      %p361 = pnand %p359, %p360
      %p362 = pneg %p361
      // Predicated region
      $region9: #{tpu_custom_call.1} parent=5 // pred_check
        _
      $region10: #{tpu_custom_call.1} parent=5 // pred_check_branch
        %364 = sbr.rel (%p361) target = $region12
      $region11: #{tpu_custom_call.1} parent=5 // pred_region
        %s365 = ssub.s32 %s26, 1
        // Predicated region
        $region13: #{tpu_custom_call.1} parent=11 // pred_check
          %p366 = pneg %p73
        $region14: #{tpu_custom_call.1} parent=11 // pred_check_branch
          %368 = sbr.rel (%p366) target = $region16
        $region15: #{tpu_custom_call.1} parent=11 // pred_region
          _
        $region16: #{tpu_custom_call.1} parent=11 // pred_fallthru
          _
        // Predicated region
        $region17: #{tpu_custom_call.1} parent=11 // pred_check
          %p369 = pneg %p94
        $region18: #{tpu_custom_call.1} parent=11 // pred_check_branch
          %371 = sbr.rel (%p369) target = $region20
        $region19: #{tpu_custom_call.1} parent=11 // pred_region
          _
        $region20: #{tpu_custom_call.1} parent=11 // pred_fallthru
          _
        // Predicated region
        $region21: #{tpu_custom_call.1} parent=11 // pred_check
          %p372 = pneg %p115
        $region22: #{tpu_custom_call.1} parent=11 // pred_check_branch
          %374 = sbr.rel (%p372) target = $region24
        $region23: #{tpu_custom_call.1} parent=11 // pred_region
          _
        $region24: #{tpu_custom_call.1} parent=11 // pred_fallthru
          _
        // Predicated region
        $region25: #{tpu_custom_call.1} parent=11 // pred_check
          %p375 = pneg %p136
        $region26: #{tpu_custom_call.1} parent=11 // pred_check_branch
          %377 = sbr.rel (%p375) target = $region28
        $region27: #{tpu_custom_call.1} parent=11 // pred_region
          %s379 = ssub.s32 16, 16
          %380 = vsyncadd [#allocation3], %s379
          %s382 = sshll.u32 [#allocation2], 4
          %s383 = int_to_ptr.vmem [resolvable:$true] %s382
          %385 = dma.hbm_to_vmem [thread:$0]  %s4, 16, %s383, [#allocation3]
        $region28: #{tpu_custom_call.1} parent=11 // pred_fallthru
          _
        // Predicated region
        $region29: #{tpu_custom_call.1} parent=11 // pred_check
          %p386 = pneg %p157
        $region30: #{tpu_custom_call.1} parent=11 // pred_check_branch
          %388 = sbr.rel (%p386) target = $region32
        $region31: #{tpu_custom_call.1} parent=11 // pred_region
          _
        $region32: #{tpu_custom_call.1} parent=11 // pred_fallthru
          _
        // Predicated region
        $region33: #{tpu_custom_call.1} parent=11 // pred_check
          %p389 = pneg %p178
        $region34: #{tpu_custom_call.1} parent=11 // pred_check_branch
          %391 = sbr.rel (%p389) target = $region36
        $region35: #{tpu_custom_call.1} parent=11 // pred_region
          %s393 = ssub.s32 16, 16
          %394 = vsyncadd [#allocation6], %s393
          %s396 = sshll.u32 [#allocation5], 4
          %s397 = int_to_ptr.vmem [resolvable:$true] %s396
          %399 = dma.hbm_to_vmem [thread:$0]  %s6, 16, %s397, [#allocation6]
        $region36: #{tpu_custom_call.1} parent=11 // pred_fallthru
          _
        // Predicated region
        $region37: #{tpu_custom_call.1} parent=11 // pred_check
          %p400 = pneg %p199
        $region38: #{tpu_custom_call.1} parent=11 // pred_check_branch
          %402 = sbr.rel (%p400) target = $region40
        $region39: #{tpu_custom_call.1} parent=11 // pred_region
          _
        $region40: #{tpu_custom_call.1} parent=11 // pred_fallthru
          _
        // Predicated region
        $region41: #{tpu_custom_call.1} parent=11 // pred_check
          %p403 = pneg %p220
        $region42: #{tpu_custom_call.1} parent=11 // pred_check_branch
          %405 = sbr.rel (%p403) target = $region44
        $region43: #{tpu_custom_call.1} parent=11 // pred_region
          %s407 = ssub.s32 16, 16
          %408 = vsyncadd [#allocation6], %s407
          %s410 = sshll.u32 [#allocation7], 4
          %s411 = int_to_ptr.vmem [resolvable:$true] %s410
          %413 = dma.hbm_to_vmem [thread:$0]  %s8, 16, %s411, [#allocation6]
        $region44: #{tpu_custom_call.1} parent=11 // pred_fallthru
          _
        // Predicated region
        $region45: #{tpu_custom_call.1} parent=11 // pred_check
          %p414 = pneg %p241
        $region46: #{tpu_custom_call.1} parent=11 // pred_check_branch
          %416 = sbr.rel (%p414) target = $region48
        $region47: #{tpu_custom_call.1} parent=11 // pred_region
          %s418 = ssub.s32 16, 16
          %419 = vsyncadd [#allocation9], %s418
          %s421 = sshll.u32 [#allocation8], 4
          %s422 = int_to_ptr.vmem [resolvable:$true] %s421
          %424 = dma.hbm_to_vmem [thread:$0]  %s9, 16, %s422, [#allocation9]
        $region48: #{tpu_custom_call.1} parent=11 // pred_fallthru
          _
        // Predicated region
        $region49: #{tpu_custom_call.1} parent=11 // pred_check
          %p425 = pneg %p262
        $region50: #{tpu_custom_call.1} parent=11 // pred_check_branch
          %427 = sbr.rel (%p425) target = $region52
        $region51: #{tpu_custom_call.1} parent=11 // pred_region
          _
        $region52: #{tpu_custom_call.1} parent=11 // pred_fallthru
          _
        // Predicated region
        $region53: #{tpu_custom_call.1} parent=11 // pred_check
          %p428 = pneg %p283
        $region54: #{tpu_custom_call.1} parent=11 // pred_check_branch
          %430 = sbr.rel (%p428) target = $region56
        $region55: #{tpu_custom_call.1} parent=11 // pred_region
          _
        $region56: #{tpu_custom_call.1} parent=11 // pred_fallthru
          _
        // Predicated region
        $region57: #{tpu_custom_call.1} parent=11 // pred_check
          %p431 = pneg %p304
        $region58: #{tpu_custom_call.1} parent=11 // pred_check_branch
          %433 = sbr.rel (%p431) target = $region60
        $region59: #{tpu_custom_call.1} parent=11 // pred_region
          _
        $region60: #{tpu_custom_call.1} parent=11 // pred_fallthru
          _
        // Predicated region
        $region61: #{tpu_custom_call.1} parent=11 // pred_check
          %p434 = pneg %p325
        $region62: #{tpu_custom_call.1} parent=11 // pred_check_branch
          %436 = sbr.rel (%p434) target = $region64
        $region63: #{tpu_custom_call.1} parent=11 // pred_region
          _
        $region64: #{tpu_custom_call.1} parent=11 // pred_fallthru
          _
      $region12: #{tpu_custom_call.1} parent=5 // pred_fallthru
        _
      %p437 = scmp.lt.s32.totalorder %s26, 2
      // Predicated region
      $region65: #{tpu_custom_call.1} parent=5 // pred_check
        %p438 = pneg %p437
      $region66: #{tpu_custom_call.1} parent=5 // pred_check_branch
        %440 = sbr.rel (%p438) target = $region68
      $region67: #{tpu_custom_call.1} parent=5 // pred_region
        // Predicated region
        $region69: #{tpu_custom_call.1} parent=67 // pred_check
          %p441 = pneg %p46
        $region70: #{tpu_custom_call.1} parent=67 // pred_check_branch
          %443 = sbr.rel (%p441) target = $region72
        $region71: #{tpu_custom_call.1} parent=67 // pred_region
          %p444 = scmp.lt.s32.totalorder %s26, 1
          %s445 = scalar_select %p444, %s26, 1
          %s446 = smul.addr %s445, 8
          %s447 = scalar_lea.vmem %s0, %s446
        $region72: #{tpu_custom_call.1} parent=67 // pred_fallthru
          _
      $region68: #{tpu_custom_call.1} parent=5 // pred_fallthru
        _
      %p448 = scmp.le.s32.totalorder 1, %s26
      %p449 = scmp.lt.s32.totalorder %s26, 3
      %p450 = pnand %p448, %p449
      %p451 = pneg %p450
      // Predicated region
      $region73: #{tpu_custom_call.1} parent=5 // pred_check
        _
      $region74: #{tpu_custom_call.1} parent=5 // pred_check_branch
        %453 = sbr.rel (%p450) target = $region76
      $region75: #{tpu_custom_call.1} parent=5 // pred_region
        %s454 = ssub.s32 %s26, 1
        // Predicated region
        $region77: #{tpu_custom_call.1} parent=75 // pred_check
          %p455 = pneg %p136
        $region78: #{tpu_custom_call.1} parent=75 // pred_check_branch
          %457 = sbr.rel (%p455) target = $region80
        $region79: #{tpu_custom_call.1} parent=75 // pred_region
          %458 = dma.done [#allocation3], 16
        $region80: #{tpu_custom_call.1} parent=75 // pred_fallthru
          _
        // Predicated region
        $region81: #{tpu_custom_call.1} parent=75 // pred_check
          %p459 = pneg %p178
        $region82: #{tpu_custom_call.1} parent=75 // pred_check_branch
          %461 = sbr.rel (%p459) target = $region84
        $region83: #{tpu_custom_call.1} parent=75 // pred_region
          %462 = dma.done [#allocation6], 16
        $region84: #{tpu_custom_call.1} parent=75 // pred_fallthru
          _
        // Predicated region
        $region85: #{tpu_custom_call.1} parent=75 // pred_check
          %p463 = pneg %p220
        $region86: #{tpu_custom_call.1} parent=75 // pred_check_branch
          %465 = sbr.rel (%p463) target = $region88
        $region87: #{tpu_custom_call.1} parent=75 // pred_region
          %466 = dma.done [#allocation6], 16
        $region88: #{tpu_custom_call.1} parent=75 // pred_fallthru
          _
        // Predicated region
        $region89: #{tpu_custom_call.1} parent=75 // pred_check
          %p467 = pneg %p241
        $region90: #{tpu_custom_call.1} parent=75 // pred_check_branch
          %469 = sbr.rel (%p467) target = $region92
        $region91: #{tpu_custom_call.1} parent=75 // pred_region
          %470 = dma.done [#allocation9], 16
        $region92: #{tpu_custom_call.1} parent=75 // pred_fallthru
          _
        %p471 = scmp.lt.s32.totalorder %s31, 1
        %s472 = scalar_select %p471, %s31, 1
        %s473 = smul.addr %s472, 8
        %s474 = scalar_lea.vmem %s0, %s473
        %p475 = pneg %p52
        %p476 = pneg %p49
        %p477 = pneg %p73
        %p478 = pneg %p70
        %p479 = pneg %p94
        %p480 = pneg %p91
        %p481 = pneg %p115
        %p482 = pneg %p112
        %p483 = pneg %p136
        %p484 = pneg %p133
        %p485 = pneg %p157
        %p486 = pneg %p154
        %p487 = pneg %p178
        %p488 = pneg %p175
        %p489 = pneg %p199
        %p490 = pneg %p196
        %p491 = pneg %p220
        %p492 = pneg %p217
        %p493 = pneg %p241
        %p494 = pneg %p238
        %p495 = pneg %p262
        %p496 = pneg %p259
        %p497 = pneg %p283
        %p498 = pneg %p280
        %p499 = pneg %p304
        %p500 = pneg %p301
        %p501 = pneg %p325
        %p502 = pneg %p322
        %p503 = pneg %p351
        %p504 = pneg %p348
        %s505 = sand.u32 %s338, 1
        %s506 = scalar_lea.sflag [#allocation4], %s505
        %s507 = sand.u32 %s338, 1
        %s508 = smul.addr %s507, 8
        %s509 = scalar_lea.vmem [#allocation10], %s508
        %p510 = scmp.lt.s32.totalorder %s31, 1
        %s511 = scalar_select %p510, %s31, 1
        %s512 = smul.addr %s511, 8
        %s513 = scalar_lea.vmem %s0, %s512
        %v515 = vld [vmem:[%s513] sm:$0xff]
        %v516 = vld [vmem:[%s1] sm:$0x1]
        %v517 = vld [vmem:[%s2] sm:$0x1]
        %vm518 = vcmask 261120
        %v519 = vsel %vm518, %v515, 0.0
        %520 = vadd.xlane.f32.xlu0 %v519
        %v521 = vpop.xlane.xlu0 %520
        %v522 = vrcp.pop 32.0
        %v523 = vmul.f32 %v521, %v522
        %v524 = vmul.f32 %v515, %v515
        %v525 = vsel %vm518, %v524, 0.0
        %526 = vadd.xlane.f32.xlu0 %v525
        %v527 = vpop.xlane.xlu0 %526
        %v528 = vmul.f32 %v527, %v522
        %v529 = vmul.f32 %v523, %v523
        %v530 = vsub.f32 %v528, %v529
        %v531 = vsub.f32 %v515, %v523
        %v532 = vadd.f32 %v530, 1e-05
        %v533 = vrsqrt.pop %v532
        %v534 = vmul.f32 %v531, %v533
        %v536 = vlaneseq
        %v537 = vshrl.u32 %v536, 7
        %v538 = vsub.s32 0, %v537
        %v539 = vrot.slane %v516, %v538
        %v541 = vmul.f32 %v534, %v539
        %v543 = vlaneseq
        %v544 = vshrl.u32 %v543, 7
        %v545 = vsub.s32 0, %v544
        %v546 = vrot.slane %v517, %v545
        %v548 = vadd.f32 %v541, %v546
        %v549 = vrot.slane %v548, 7
        %v550 = vlaneseq
        %v551 = vshrl.u32 %v550, 7
        %vm552 = vcmp.lt.s32.totalorder %v551, 0
        %v553 = vsub.s32 0, %v551
        %v554 = vsel %vm552, %v553, %v551
        %v555 = vshrl.u32 %v554, 3
        %v556 = vand.u32 %v554, 7
        %v557 = vsub.s32 0, %v556
        %v558 = vsel %vm552, %v557, %v556
        %vm559 = vcmp.ne.s32.totalorder %v558, 0
        %vm560 = vcmp.lt.s32.totalorder %v558, 0
        %vm561 = vmand %vm560, %vm559
        %v562 = vadd.s32 %v558, 8
        %v563 = vsel %vm561, %v562, %v558
        %vm564 = vcmp.eq.s32.totalorder %v563, 0
        %v565 = vlaneseq
        %v566 = vand.u32 %v565, 127
        %vm567 = vcmp.lt.s32.totalorder %v566, 16
        %v568 = vsel %vm564, 1, 0
        %vm569 = vcmp.eq.s32.totalorder %v568, 1
        %v570 = vsel %vm569, 0.0, %v549
        %v571 = vsel %vm567, 1, 0
        %vm572 = vcmp.eq.s32.totalorder %v571, 1
        %v573 = vsel %vm572, %v570, %v548
        %v574 = vpack.c.bf16 %v573, %v573
        %v575 = vld [vmem:[%s3] sm:$0xf]
        %v576 = vld [vmem:[%s3 + $0x4] sm:$0xf]
        %v577 = vld [vmem:[%s3 + $0x8] sm:$0xf]
        %v578 = vld [vmem:[%s3 + $0xc] sm:$0xf]
        %v579 = vld [vmem:[#allocation2] sm:$0x1]
        %v581 = vlaneseq
        %v582 = vshrl.u32 %v581, 7
        %v583 = vsub.s32 0, %v582
        %v584 = vrot.slane %v579, %v583
        %v590 = vunpack.c.l.b16 %v575
        %v591 = vunpack.c.l.b16 %v576
        %v592 = vunpack.c.l.b16 %v577
        %v593 = vunpack.c.l.b16 %v578
        %v594 = vpack.c.b16 %v591, %v590
        %v595 = vpack.c.b16 %v593, %v592
        %v599 = vsel %vm518, %v574, 0
        %601 = vmatprep.subr.bf16.mxu0 0
        %602 = vmatpush1.bf16.msra.mxu0 %v594
        %603 = vmatprep.subr.bf16.mxu0 0
        %604 = vmatpush1.bf16.msra.mxu0 %v595
        %605 = vmatprep.subr.bf16.mxu0 0
        %606 = vmatpush1.bf16.msra.mxu0 0
        %607 = vmatprep.subr.bf16.mxu0 0
        %608 = vmatpush1.bf16.msra.mxu0 0
        %609 = vmatprep.subr.bf16.mxu0 0
        %610 = vmatpush1.bf16.msra.mxu0 0
        %611 = vmatprep.subr.bf16.mxu0 0
        %612 = vmatpush1.bf16.msra.mxu0 0
        %613 = vmatprep.subr.bf16.mxu0 0
        %614 = vmatpush1.bf16.msra.mxu0 0
        %615 = vmatprep.subr.bf16.mxu0 0
        %616 = vmatpush1.bf16.msra.mxu0 0
        %617 = vmatprep.subr.bf16.mxu0 0
        %618 = vmatpush1.bf16.msra.mxu0 0
        %619 = vmatprep.subr.bf16.mxu0 0
        %620 = vmatpush1.bf16.msra.mxu0 0
        %621 = vmatprep.subr.bf16.mxu0 0
        %622 = vmatpush1.bf16.msra.mxu0 0
        %623 = vmatprep.subr.bf16.mxu0 0
        %624 = vmatpush1.bf16.msra.mxu0 0
        %625 = vmatprep.subr.bf16.mxu0 0
        %626 = vmatpush1.bf16.msra.mxu0 0
        %627 = vmatprep.subr.bf16.mxu0 0
        %628 = vmatpush1.bf16.msra.mxu0 0
        %629 = vmatprep.subr.bf16.mxu0 0
        %630 = vmatpush1.bf16.msra.mxu0 0
        %631 = vmatprep.subr.bf16.mxu0 0
        %632 = vmatpush1.bf16.msra.mxu0 0
        %633 = vmatprep.mubr.bf16.mxu0 0
        %634 = vmatmul.mubr.bf16.gmra.mrb[0].mxu0 %v599
        %v635 = vpop.f32.mrb[0].mxu0
        %v636 = vadd.f32 %v584, %v635
        %v637 = vpop.f32.mrb[0].mxu0
        %v638 = vpop.f32.mrb[0].mxu0
        %v639 = vpop.f32.mrb[0].mxu0
        %640 = vdwg.mxu0
        %v641 = vmul.f32 %v636, 0.35355338
        %v642 = vpack.c.bf16 %v641, %v641
        %v643 = vpack.c.bf16 %v636, %v636
        %vm644 = vcmp.le.s32.totalorder %v566, %v551
        %646 = vrot.lane.b32.xlu0 %v643, 96
        %v647 = vpop.permute.xlu0 %646
        %vm648 = vcmask 64512
        %v650 = vsel %vm648, %v642, 0
        %v653 = vsel %vm648, %v647, 0
        %655 = vmatprep.subr.bf16.mxu0 0
        %656 = vmatpush1.bf16.xpose.msra.mxu0 %v653
        %657 = vmatprep.subr.bf16.mxu0 0
        %658 = vmatpush1.bf16.xpose.msra.mxu0 0
        %659 = vmatprep.subr.bf16.mxu0 0
        %660 = vmatpush1.bf16.xpose.msra.mxu0 0
        %661 = vmatprep.subr.bf16.mxu0 0
        %662 = vmatpush1.bf16.xpose.msra.mxu0 0
        %663 = vmatprep.subr.bf16.mxu0 0
        %664 = vmatpush1.bf16.xpose.msra.mxu0 0
        %665 = vmatprep.subr.bf16.mxu0 0
        %666 = vmatpush1.bf16.xpose.msra.mxu0 0
        %667 = vmatprep.subr.bf16.mxu0 0
        %668 = vmatpush1.bf16.xpose.msra.mxu0 0
        %669 = vmatprep.subr.bf16.mxu0 0
        %670 = vmatpush1.bf16.xpose.msra.mxu0 0
        %671 = vmatprep.subr.bf16.mxu0 0
        %672 = vmatpush1.bf16.xpose.msra.mxu0 0
        %673 = vmatprep.subr.bf16.mxu0 0
        %674 = vmatpush1.bf16.xpose.msra.mxu0 0
        %675 = vmatprep.subr.bf16.mxu0 0
        %676 = vmatpush1.bf16.xpose.msra.mxu0 0
        %677 = vmatprep.subr.bf16.mxu0 0
        %678 = vmatpush1.bf16.xpose.msra.mxu0 0
        %679 = vmatprep.subr.bf16.mxu0 0
        %680 = vmatpush1.bf16.xpose.msra.mxu0 0
        %681 = vmatprep.subr.bf16.mxu0 0
        %682 = vmatpush1.bf16.xpose.msra.mxu0 0
        %683 = vmatprep.subr.bf16.mxu0 0
        %684 = vmatpush1.bf16.xpose.msra.mxu0 0
        %685 = vmatprep.subr.bf16.mxu0 0
        %686 = vmatpush1.bf16.xpose.msra.mxu0 0
        %687 = vmatprep.mubr.bf16.mxu0 0
        %688 = vmatmul.mubr.bf16.gmra.mrb[0].mxu0 %v650
        %v689 = vpop.f32.mrb[0].mxu0
        %v690 = vadd.f32 0.0, %v689
        %v691 = vpop.f32.mrb[0].mxu0
        %v692 = vpop.f32.mrb[0].mxu0
        %v693 = vpop.f32.mrb[0].mxu0
        %694 = vdwg.mxu0
        %v695 = vsel %vm644, %v690, -1e+30
        %v696 = vsel %vm648, %v695, -inf
        %697 = vmax.xlane.f32.xlu0 %v696
        %v698 = vpop.xlane.xlu0 %697
        %v699 = vsub.f32 %v695, %v698
        %v700 = vmul.f32 %v699, 1.442695
        %v701 = vpow.pop %v700
        %v702 = vsel %vm648, %v701, 0.0
        %703 = vadd.xlane.f32.xlu0 %v702
        %v704 = vpop.xlane.xlu0 %703
        %v705 = vrcp.pop %v704
        %v706 = vmul.f32 %v701, %v705
        %v707 = vld [vmem:[%s7] sm:$0xff]
        %v708 = vmul.f32 %v706, %v707
        %v709 = vpack.c.bf16 %v708, %v708
        %710 = vrot.lane.b32.xlu0 %v643, 64
        %v711 = vpop.permute.xlu0 %710
        %v713 = vsel %vm648, %v709, 0
        %vm715 = vcmask 1043456
        %v717 = vsel %vm715, %v711, 0
        %719 = vmatprep.subr.bf16.mxu0 0
        %720 = vmatpush1.bf16.msra.mxu0 %v717
        %721 = vmatprep.subr.bf16.mxu0 0
        %722 = vmatpush1.bf16.msra.mxu0 0
        %723 = vmatprep.subr.bf16.mxu0 0
        %724 = vmatpush1.bf16.msra.mxu0 0
        %725 = vmatprep.subr.bf16.mxu0 0
        %726 = vmatpush1.bf16.msra.mxu0 0
        %727 = vmatprep.subr.bf16.mxu0 0
        %728 = vmatpush1.bf16.msra.mxu0 0
        %729 = vmatprep.subr.bf16.mxu0 0
        %730 = vmatpush1.bf16.msra.mxu0 0
        %731 = vmatprep.subr.bf16.mxu0 0
        %732 = vmatpush1.bf16.msra.mxu0 0
        %733 = vmatprep.subr.bf16.mxu0 0
        %734 = vmatpush1.bf16.msra.mxu0 0
        %735 = vmatprep.subr.bf16.mxu0 0
        %736 = vmatpush1.bf16.msra.mxu0 0
        %737 = vmatprep.subr.bf16.mxu0 0
        %738 = vmatpush1.bf16.msra.mxu0 0
        %739 = vmatprep.subr.bf16.mxu0 0
        %740 = vmatpush1.bf16.msra.mxu0 0
        %741 = vmatprep.subr.bf16.mxu0 0
        %742 = vmatpush1.bf16.msra.mxu0 0
        %743 = vmatprep.subr.bf16.mxu0 0
        %744 = vmatpush1.bf16.msra.mxu0 0
        %745 = vmatprep.subr.bf16.mxu0 0
        %746 = vmatpush1.bf16.msra.mxu0 0
        %747 = vmatprep.subr.bf16.mxu0 0
        %748 = vmatpush1.bf16.msra.mxu0 0
        %749 = vmatprep.subr.bf16.mxu0 0
        %750 = vmatpush1.bf16.msra.mxu0 0
        %751 = vmatprep.mubr.bf16.mxu0 0
        %752 = vmatmul.mubr.bf16.gmra.mrb[0].mxu0 %v713
        %v753 = vpop.f32.mrb[0].mxu0
        %v754 = vadd.f32 0.0, %v753
        %v755 = vpop.f32.mrb[0].mxu0
        %v756 = vpop.f32.mrb[0].mxu0
        %v757 = vpop.f32.mrb[0].mxu0
        %758 = vdwg.mxu0
        %760 = vrot.lane.b32.xlu0 %v642, 120
        %v761 = vpop.permute.xlu0 %760
        %762 = vrot.lane.b32.xlu0 %v643, 88
        %v763 = vpop.permute.xlu0 %762
        %v765 = vsel %vm648, %v761, 0
        %v768 = vsel %vm648, %v763, 0
        %770 = vmatprep.subr.bf16.mxu0 0
        %771 = vmatpush1.bf16.xpose.msra.mxu0 %v768
        %772 = vmatprep.subr.bf16.mxu0 0
        %773 = vmatpush1.bf16.xpose.msra.mxu0 0
        %774 = vmatprep.subr.bf16.mxu0 0
        %775 = vmatpush1.bf16.xpose.msra.mxu0 0
        %776 = vmatprep.subr.bf16.mxu0 0
        %777 = vmatpush1.bf16.xpose.msra.mxu0 0
        %778 = vmatprep.subr.bf16.mxu0 0
        %779 = vmatpush1.bf16.xpose.msra.mxu0 0
        %780 = vmatprep.subr.bf16.mxu0 0
        %781 = vmatpush1.bf16.xpose.msra.mxu0 0
        %782 = vmatprep.subr.bf16.mxu0 0
        %783 = vmatpush1.bf16.xpose.msra.mxu0 0
        %784 = vmatprep.subr.bf16.mxu0 0
        %785 = vmatpush1.bf16.xpose.msra.mxu0 0
        %786 = vmatprep.subr.bf16.mxu0 0
        %787 = vmatpush1.bf16.xpose.msra.mxu0 0
        %788 = vmatprep.subr.bf16.mxu0 0
        %789 = vmatpush1.bf16.xpose.msra.mxu0 0
        %790 = vmatprep.subr.bf16.mxu0 0
        %791 = vmatpush1.bf16.xpose.msra.mxu0 0
        %792 = vmatprep.subr.bf16.mxu0 0
        %793 = vmatpush1.bf16.xpose.msra.mxu0 0
        %794 = vmatprep.subr.bf16.mxu0 0
        %795 = vmatpush1.bf16.xpose.msra.mxu0 0
        %796 = vmatprep.subr.bf16.mxu0 0
        %797 = vmatpush1.bf16.xpose.msra.mxu0 0
        %798 = vmatprep.subr.bf16.mxu0 0
        %799 = vmatpush1.bf16.xpose.msra.mxu0 0
        %800 = vmatprep.subr.bf16.mxu0 0
        %801 = vmatpush1.bf16.xpose.msra.mxu0 0
        %802 = vmatprep.mubr.bf16.mxu0 0
        %803 = vmatmul.mubr.bf16.gmra.mrb[0].mxu0 %v765
        %v804 = vpop.f32.mrb[0].mxu0
        %v805 = vadd.f32 0.0, %v804
        %v806 = vpop.f32.mrb[0].mxu0
        %v807 = vpop.f32.mrb[0].mxu0
        %v808 = vpop.f32.mrb[0].mxu0
        %809 = vdwg.mxu0
        %v810 = vsel %vm644, %v805, -1e+30
        %v811 = vsel %vm648, %v810, -inf
        %812 = vmax.xlane.f32.xlu0 %v811
        %v813 = vpop.xlane.xlu0 %812
        %v814 = vsub.f32 %v810, %v813
        %v815 = vmul.f32 %v814, 1.442695
        %v816 = vpow.pop %v815
        %v817 = vsel %vm648, %v816, 0.0
        %818 = vadd.xlane.f32.xlu0 %v817
        %v819 = vpop.xlane.xlu0 %818
        %v820 = vrcp.pop %v819
        %v821 = vmul.f32 %v816, %v820
        %s822 = scalar_lea.vmem %s7, 8
        %v823 = vld [vmem:[%s822] sm:$0xff]
        %v824 = vmul.f32 %v821, %v823
        %v825 = vpack.c.bf16 %v824, %v824
        %826 = vrot.lane.b32.xlu0 %v643, 56
        %v827 = vpop.permute.xlu0 %826
        %v829 = vsel %vm648, %v825, 0
        %v832 = vsel %vm715, %v827, 0
        %834 = vmatprep.subr.bf16.mxu0 0
        %835 = vmatpush1.bf16.msra.mxu0 %v832
        %836 = vmatprep.subr.bf16.mxu0 0
        %837 = vmatpush1.bf16.msra.mxu0 0
        %838 = vmatprep.subr.bf16.mxu0 0
        %839 = vmatpush1.bf16.msra.mxu0 0
        %840 = vmatprep.subr.bf16.mxu0 0
        %841 = vmatpush1.bf16.msra.mxu0 0
        %842 = vmatprep.subr.bf16.mxu0 0
        %843 = vmatpush1.bf16.msra.mxu0 0
        %844 = vmatprep.subr.bf16.mxu0 0
        %845 = vmatpush1.bf16.msra.mxu0 0
        %846 = vmatprep.subr.bf16.mxu0 0
        %847 = vmatpush1.bf16.msra.mxu0 0
        %848 = vmatprep.subr.bf16.mxu0 0
        %849 = vmatpush1.bf16.msra.mxu0 0
        %850 = vmatprep.subr.bf16.mxu0 0
        %851 = vmatpush1.bf16.msra.mxu0 0
        %852 = vmatprep.subr.bf16.mxu0 0
        %853 = vmatpush1.bf16.msra.mxu0 0
        %854 = vmatprep.subr.bf16.mxu0 0
        %855 = vmatpush1.bf16.msra.mxu0 0
        %856 = vmatprep.subr.bf16.mxu0 0
        %857 = vmatpush1.bf16.msra.mxu0 0
        %858 = vmatprep.subr.bf16.mxu0 0
        %859 = vmatpush1.bf16.msra.mxu0 0
        %860 = vmatprep.subr.bf16.mxu0 0
        %861 = vmatpush1.bf16.msra.mxu0 0
        %862 = vmatprep.subr.bf16.mxu0 0
        %863 = vmatpush1.bf16.msra.mxu0 0
        %864 = vmatprep.subr.bf16.mxu0 0
        %865 = vmatpush1.bf16.msra.mxu0 0
        %866 = vmatprep.mubr.bf16.mxu0 0
        %867 = vmatmul.mubr.bf16.gmra.mrb[0].mxu0 %v829
        %v868 = vpop.f32.mrb[0].mxu0
        %v869 = vadd.f32 0.0, %v868
        %v870 = vpop.f32.mrb[0].mxu0
        %v871 = vpop.f32.mrb[0].mxu0
        %v872 = vpop.f32.mrb[0].mxu0
        %873 = vdwg.mxu0
        %874 = vrot.lane.b32.xlu0 %v642, 112
        %v875 = vpop.permute.xlu0 %874
        %876 = vrot.lane.b32.xlu0 %v643, 80
        %v877 = vpop.permute.xlu0 %876
        %v879 = vsel %vm648, %v875, 0
        %v882 = vsel %vm648, %v877, 0
        %884 = vmatprep.subr.bf16.mxu0 0
        %885 = vmatpush1.bf16.xpose.msra.mxu0 %v882
        %886 = vmatprep.subr.bf16.mxu0 0
        %887 = vmatpush1.bf16.xpose.msra.mxu0 0
        %888 = vmatprep.subr.bf16.mxu0 0
        %889 = vmatpush1.bf16.xpose.msra.mxu0 0
        %890 = vmatprep.subr.bf16.mxu0 0
        %891 = vmatpush1.bf16.xpose.msra.mxu0 0
        %892 = vmatprep.subr.bf16.mxu0 0
        %893 = vmatpush1.bf16.xpose.msra.mxu0 0
        %894 = vmatprep.subr.bf16.mxu0 0
        %895 = vmatpush1.bf16.xpose.msra.mxu0 0
        %896 = vmatprep.subr.bf16.mxu0 0
        %897 = vmatpush1.bf16.xpose.msra.mxu0 0
        %898 = vmatprep.subr.bf16.mxu0 0
        %899 = vmatpush1.bf16.xpose.msra.mxu0 0
        %900 = vmatprep.subr.bf16.mxu0 0
        %901 = vmatpush1.bf16.xpose.msra.mxu0 0
        %902 = vmatprep.subr.bf16.mxu0 0
        %903 = vmatpush1.bf16.xpose.msra.mxu0 0
        %904 = vmatprep.subr.bf16.mxu0 0
        %905 = vmatpush1.bf16.xpose.msra.mxu0 0
        %906 = vmatprep.subr.bf16.mxu0 0
        %907 = vmatpush1.bf16.xpose.msra.mxu0 0
        %908 = vmatprep.subr.bf16.mxu0 0
        %909 = vmatpush1.bf16.xpose.msra.mxu0 0
        %910 = vmatprep.subr.bf16.mxu0 0
        %911 = vmatpush1.bf16.xpose.msra.mxu0 0
        %912 = vmatprep.subr.bf16.mxu0 0
        %913 = vmatpush1.bf16.xpose.msra.mxu0 0
        %914 = vmatprep.subr.bf16.mxu0 0
        %915 = vmatpush1.bf16.xpose.msra.mxu0 0
        %916 = vmatprep.mubr.bf16.mxu0 0
        %917 = vmatmul.mubr.bf16.gmra.mrb[0].mxu0 %v879
        %v918 = vpop.f32.mrb[0].mxu0
        %v919 = vadd.f32 0.0, %v918
        %v920 = vpop.f32.mrb[0].mxu0
        %v921 = vpop.f32.mrb[0].mxu0
        %v922 = vpop.f32.mrb[0].mxu0
        %923 = vdwg.mxu0
        %v924 = vsel %vm644, %v919, -1e+30
        %v925 = vsel %vm648, %v924, -inf
        %926 = vmax.xlane.f32.xlu0 %v925
        %v927 = vpop.xlane.xlu0 %926
        %v928 = vsub.f32 %v924, %v927
        %v929 = vmul.f32 %v928, 1.442695
        %v930 = vpow.pop %v929
        %v931 = vsel %vm648, %v930, 0.0
        %932 = vadd.xlane.f32.xlu0 %v931
        %v933 = vpop.xlane.xlu0 %932
        %v934 = vrcp.pop %v933
        %v935 = vmul.f32 %v930, %v934
        %s936 = scalar_lea.vmem %s7, 16
        %v937 = vld [vmem:[%s936] sm:$0xff]
        %v938 = vmul.f32 %v935, %v937
        %v939 = vpack.c.bf16 %v938, %v938
        %940 = vrot.lane.b32.xlu0 %v643, 48
        %v941 = vpop.permute.xlu0 %940
        %v943 = vsel %vm648, %v939, 0
        %v946 = vsel %vm715, %v941, 0
        %948 = vmatprep.subr.bf16.mxu0 0
        %949 = vmatpush1.bf16.msra.mxu0 %v946
        %950 = vmatprep.subr.bf16.mxu0 0
        %951 = vmatpush1.bf16.msra.mxu0 0
        %952 = vmatprep.subr.bf16.mxu0 0
        %953 = vmatpush1.bf16.msra.mxu0 0
        %954 = vmatprep.subr.bf16.mxu0 0
        %955 = vmatpush1.bf16.msra.mxu0 0
        %956 = vmatprep.subr.bf16.mxu0 0
        %957 = vmatpush1.bf16.msra.mxu0 0
        %958 = vmatprep.subr.bf16.mxu0 0
        %959 = vmatpush1.bf16.msra.mxu0 0
        %960 = vmatprep.subr.bf16.mxu0 0
        %961 = vmatpush1.bf16.msra.mxu0 0
        %962 = vmatprep.subr.bf16.mxu0 0
        %963 = vmatpush1.bf16.msra.mxu0 0
        %964 = vmatprep.subr.bf16.mxu0 0
        %965 = vmatpush1.bf16.msra.mxu0 0
        %966 = vmatprep.subr.bf16.mxu0 0
        %967 = vmatpush1.bf16.msra.mxu0 0
        %968 = vmatprep.subr.bf16.mxu0 0
        %969 = vmatpush1.bf16.msra.mxu0 0
        %970 = vmatprep.subr.bf16.mxu0 0
        %971 = vmatpush1.bf16.msra.mxu0 0
        %972 = vmatprep.subr.bf16.mxu0 0
        %973 = vmatpush1.bf16.msra.mxu0 0
        %974 = vmatprep.subr.bf16.mxu0 0
        %975 = vmatpush1.bf16.msra.mxu0 0
        %976 = vmatprep.subr.bf16.mxu0 0
        %977 = vmatpush1.bf16.msra.mxu0 0
        %978 = vmatprep.subr.bf16.mxu0 0
        %979 = vmatpush1.bf16.msra.mxu0 0
        %980 = vmatprep.mubr.bf16.mxu0 0
        %981 = vmatmul.mubr.bf16.gmra.mrb[0].mxu0 %v943
        %v982 = vpop.f32.mrb[0].mxu0
        %v983 = vadd.f32 0.0, %v982
        %v984 = vpop.f32.mrb[0].mxu0
        %v985 = vpop.f32.mrb[0].mxu0
        %v986 = vpop.f32.mrb[0].mxu0
        %987 = vdwg.mxu0
        %988 = vrot.lane.b32.xlu0 %v642, 104
        %v989 = vpop.permute.xlu0 %988
        %990 = vrot.lane.b32.xlu0 %v643, 72
        %v991 = vpop.permute.xlu0 %990
        %v993 = vsel %vm648, %v989, 0
        %v996 = vsel %vm648, %v991, 0
        %998 = vmatprep.subr.bf16.mxu0 0
        %999 = vmatpush1.bf16.xpose.msra.mxu0 %v996
        %1000 = vmatprep.subr.bf16.mxu0 0
        %1001 = vmatpush1.bf16.xpose.msra.mxu0 0
        %1002 = vmatprep.subr.bf16.mxu0 0
        %1003 = vmatpush1.bf16.xpose.msra.mxu0 0
        %1004 = vmatprep.subr.bf16.mxu0 0
        %1005 = vmatpush1.bf16.xpose.msra.mxu0 0
        %1006 = vmatprep.subr.bf16.mxu0 0
        %1007 = vmatpush1.bf16.xpose.msra.mxu0 0
        %1008 = vmatprep.subr.bf16.mxu0 0
        %1009 = vmatpush1.bf16.xpose.msra.mxu0 0
        %1010 = vmatprep.subr.bf16.mxu0 0
        %1011 = vmatpush1.bf16.xpose.msra.mxu0 0
        %1012 = vmatprep.subr.bf16.mxu0 0
        %1013 = vmatpush1.bf16.xpose.msra.mxu0 0
        %1014 = vmatprep.subr.bf16.mxu0 0
        %1015 = vmatpush1.bf16.xpose.msra.mxu0 0
        %1016 = vmatprep.subr.bf16.mxu0 0
        %1017 = vmatpush1.bf16.xpose.msra.mxu0 0
        %1018 = vmatprep.subr.bf16.mxu0 0
        %1019 = vmatpush1.bf16.xpose.msra.mxu0 0
        %1020 = vmatprep.subr.bf16.mxu0 0
        %1021 = vmatpush1.bf16.xpose.msra.mxu0 0
        %1022 = vmatprep.subr.bf16.mxu0 0
        %1023 = vmatpush1.bf16.xpose.msra.mxu0 0
        %1024 = vmatprep.subr.bf16.mxu0 0
        %1025 = vmatpush1.bf16.xpose.msra.mxu0 0
        %1026 = vmatprep.subr.bf16.mxu0 0
        %1027 = vmatpush1.bf16.xpose.msra.mxu0 0
        %1028 = vmatprep.subr.bf16.mxu0 0
        %1029 = vmatpush1.bf16.xpose.msra.mxu0 0
        %1030 = vmatprep.mubr.bf16.mxu0 0
        %1031 = vmatmul.mubr.bf16.gmra.mrb[0].mxu0 %v993
        %v1032 = vpop.f32.mrb[0].mxu0
        %v1033 = vadd.f32 0.0, %v1032
        %v1034 = vpop.f32.mrb[0].mxu0
        %v1035 = vpop.f32.mrb[0].mxu0
        %v1036 = vpop.f32.mrb[0].mxu0
        %1037 = vdwg.mxu0
        %v1038 = vsel %vm644, %v1033, -1e+30
        %v1039 = vsel %vm648, %v1038, -inf
        %1040 = vmax.xlane.f32.xlu0 %v1039
        %v1041 = vpop.xlane.xlu0 %1040
        %v1042 = vsub.f32 %v1038, %v1041
        %v1043 = vmul.f32 %v1042, 1.442695
        %v1044 = vpow.pop %v1043
        %v1045 = vsel %vm648, %v1044, 0.0
        %1046 = vadd.xlane.f32.xlu0 %v1045
        %v1047 = vpop.xlane.xlu0 %1046
        %v1048 = vrcp.pop %v1047
        %v1049 = vmul.f32 %v1044, %v1048
        %s1050 = scalar_lea.vmem %s7, 24
        %v1051 = vld [vmem:[%s1050] sm:$0xff]
        %v1052 = vmul.f32 %v1049, %v1051
        %v1053 = vpack.c.bf16 %v1052, %v1052
        %1054 = vrot.lane.b32.xlu0 %v643, 40
        %v1055 = vpop.permute.xlu0 %1054
        %v1057 = vsel %vm648, %v1053, 0
        %v1060 = vsel %vm715, %v1055, 0
        %1062 = vmatprep.subr.bf16.mxu0 0
        %1063 = vmatpush1.bf16.msra.mxu0 %v1060
        %1064 = vmatprep.subr.bf16.mxu0 0
        %1065 = vmatpush1.bf16.msra.mxu0 0
        %1066 = vmatprep.subr.bf16.mxu0 0
        %1067 = vmatpush1.bf16.msra.mxu0 0
        %1068 = vmatprep.subr.bf16.mxu0 0
        %1069 = vmatpush1.bf16.msra.mxu0 0
        %1070 = vmatprep.subr.bf16.mxu0 0
        %1071 = vmatpush1.bf16.msra.mxu0 0
        %1072 = vmatprep.subr.bf16.mxu0 0
        %1073 = vmatpush1.bf16.msra.mxu0 0
        %1074 = vmatprep.subr.bf16.mxu0 0
        %1075 = vmatpush1.bf16.msra.mxu0 0
        %1076 = vmatprep.subr.bf16.mxu0 0
        %1077 = vmatpush1.bf16.msra.mxu0 0
        %1078 = vmatprep.subr.bf16.mxu0 0
        %1079 = vmatpush1.bf16.msra.mxu0 0
        %1080 = vmatprep.subr.bf16.mxu0 0
        %1081 = vmatpush1.bf16.msra.mxu0 0
        %1082 = vmatprep.subr.bf16.mxu0 0
        %1083 = vmatpush1.bf16.msra.mxu0 0
        %1084 = vmatprep.subr.bf16.mxu0 0
        %1085 = vmatpush1.bf16.msra.mxu0 0
        %1086 = vmatprep.subr.bf16.mxu0 0
        %1087 = vmatpush1.bf16.msra.mxu0 0
        %1088 = vmatprep.subr.bf16.mxu0 0
        %1089 = vmatpush1.bf16.msra.mxu0 0
        %1090 = vmatprep.subr.bf16.mxu0 0
        %1091 = vmatpush1.bf16.msra.mxu0 0
        %1092 = vmatprep.subr.bf16.mxu0 0
        %1093 = vmatpush1.bf16.msra.mxu0 0
        %1094 = vmatprep.mubr.bf16.mxu0 0
        %1095 = vmatmul.mubr.bf16.gmra.mrb[0].mxu0 %v1057
        %v1096 = vpop.f32.mrb[0].mxu0
        %v1097 = vadd.f32 0.0, %v1096
        %v1098 = vpop.f32.mrb[0].mxu0
        %v1099 = vpop.f32.mrb[0].mxu0
        %v1100 = vpop.f32.mrb[0].mxu0
        %1101 = vdwg.mxu0
        %1103 = vrot.lane.b32.xlu0 %v869, 8
        %v1104 = vpop.permute.xlu0 %1103
        %1107 = vrot.lane.b32.xlu0 %v983, 16
        %v1108 = vpop.permute.xlu0 %1107
        %1111 = vrot.lane.b32.xlu0 %v1097, 24
        %v1112 = vpop.permute.xlu0 %1111
        %v1114 = vsel %vm648, %v754, %v1104
        %vm1115 = vcmask 130048
        %v1116 = vsel %vm1115, %v1114, %v1108
        %vm1117 = vcmask 195584
        %v1118 = vsel %vm1117, %v1116, %v1112
        %v1119 = vpack.c.bf16 %v1118, %v1118
        %v1120 = vld [vmem:[%s5] sm:$0xf]
        %v1121 = vld [vmem:[%s5 + $0x4] sm:$0xf]
        %v1122 = vld [vmem:[%s5 + $0x8] sm:$0xf]
        %v1123 = vld [vmem:[%s5 + $0xc] sm:$0xf]
        %v1124 = vld [vmem:[#allocation5] sm:$0x1]
        %v1126 = vlaneseq
        %v1127 = vshrl.u32 %v1126, 7
        %v1128 = vsub.s32 0, %v1127
        %v1129 = vrot.slane %v1124, %v1128
        %v1135 = vunpack.c.l.b16 %v1120
        %v1136 = vunpack.c.l.b16 %v1121
        %v1137 = vunpack.c.l.b16 %v1122
        %v1138 = vunpack.c.l.b16 %v1123
        %v1139 = vpack.c.b16 %v1136, %v1135
        %v1140 = vpack.c.b16 %v1138, %v1137
        %v1144 = vsel %vm518, %v1119, 0
        %1146 = vmatprep.subr.bf16.mxu0 0
        %1147 = vmatpush1.bf16.msra.mxu0 %v1139
        %1148 = vmatprep.subr.bf16.mxu0 0
        %1149 = vmatpush1.bf16.msra.mxu0 %v1140
        %1150 = vmatprep.subr.bf16.mxu0 0
        %1151 = vmatpush1.bf16.msra.mxu0 0
        %1152 = vmatprep.subr.bf16.mxu0 0
        %1153 = vmatpush1.bf16.msra.mxu0 0
        %1154 = vmatprep.subr.bf16.mxu0 0
        %1155 = vmatpush1.bf16.msra.mxu0 0
        %1156 = vmatprep.subr.bf16.mxu0 0
        %1157 = vmatpush1.bf16.msra.mxu0 0
        %1158 = vmatprep.subr.bf16.mxu0 0
        %1159 = vmatpush1.bf16.msra.mxu0 0
        %1160 = vmatprep.subr.bf16.mxu0 0
        %1161 = vmatpush1.bf16.msra.mxu0 0
        %1162 = vmatprep.subr.bf16.mxu0 0
        %1163 = vmatpush1.bf16.msra.mxu0 0
        %1164 = vmatprep.subr.bf16.mxu0 0
        %1165 = vmatpush1.bf16.msra.mxu0 0
        %1166 = vmatprep.subr.bf16.mxu0 0
        %1167 = vmatpush1.bf16.msra.mxu0 0
        %1168 = vmatprep.subr.bf16.mxu0 0
        %1169 = vmatpush1.bf16.msra.mxu0 0
        %1170 = vmatprep.subr.bf16.mxu0 0
        %1171 = vmatpush1.bf16.msra.mxu0 0
        %1172 = vmatprep.subr.bf16.mxu0 0
        %1173 = vmatpush1.bf16.msra.mxu0 0
        %1174 = vmatprep.subr.bf16.mxu0 0
        %1175 = vmatpush1.bf16.msra.mxu0 0
        %1176 = vmatprep.subr.bf16.mxu0 0
        %1177 = vmatpush1.bf16.msra.mxu0 0
        %1178 = vmatprep.mubr.bf16.mxu0 0
        %1179 = vmatmul.mubr.bf16.gmra.mrb[0].mxu0 %v1144
        %v1180 = vpop.f32.mrb[0].mxu0
        %v1181 = vadd.f32 %v1129, %v1180
        %v1182 = vpop.f32.mrb[0].mxu0
        %v1183 = vpop.f32.mrb[0].mxu0
        %v1184 = vpop.f32.mrb[0].mxu0
        %1185 = vdwg.mxu0
        %v1186 = vadd.f32 %v515, %v1181
        %v1187 = vld [vmem:[#allocation7] sm:$0x1]
        %v1188 = vld [vmem:[#allocation8] sm:$0x1]
        %v1189 = vsel %vm518, %v1186, 0.0
        %1190 = vadd.xlane.f32.xlu0 %v1189
        %v1191 = vpop.xlane.xlu0 %1190
        %v1192 = vmul.f32 %v1191, %v522
        %v1193 = vmul.f32 %v1186, %v1186
        %v1194 = vsel %vm518, %v1193, 0.0
        %1195 = vadd.xlane.f32.xlu0 %v1194
        %v1196 = vpop.xlane.xlu0 %1195
        %v1197 = vmul.f32 %v1196, %v522
        %v1198 = vmul.f32 %v1192, %v1192
        %v1199 = vsub.f32 %v1197, %v1198
        %v1200 = vsub.f32 %v1186, %v1192
        %v1201 = vadd.f32 %v1199, 1e-05
        %v1202 = vrsqrt.pop %v1201
        %v1203 = vmul.f32 %v1200, %v1202
        %v1205 = vlaneseq
        %v1206 = vshrl.u32 %v1205, 7
        %v1207 = vsub.s32 0, %v1206
        %v1208 = vrot.slane %v1187, %v1207
        %v1210 = vmul.f32 %v1203, %v1208
        %v1212 = vlaneseq
        %v1213 = vshrl.u32 %v1212, 7
        %v1214 = vsub.s32 0, %v1213
        %v1215 = vrot.slane %v1188, %v1214
        %v1217 = vadd.f32 %v1210, %v1215
        %v1218 = vpack.c.bf16 %v1217, %v1217
        %v1219 = vld [vmem:[%s10] sm:$0xf]
        %v1220 = vld [vmem:[%s10 + $0x4] sm:$0xf]
        %v1221 = vld [vmem:[%s10 + $0x8] sm:$0xf]
        %v1222 = vld [vmem:[%s10 + $0xc] sm:$0xf]
        %v1223 = vld [vmem:[%s11] sm:$0x1]
        %v1225 = vlaneseq
        %v1226 = vshrl.u32 %v1225, 7
        %v1227 = vsub.s32 0, %v1226
        %v1228 = vrot.slane %v1223, %v1227
        %v1234 = vunpack.c.l.b16 %v1219
        %v1235 = vunpack.c.l.b16 %v1220
        %v1236 = vunpack.c.l.b16 %v1221
        %v1237 = vunpack.c.l.b16 %v1222
        %v1238 = vpack.c.b16 %v1235, %v1234
        %v1239 = vpack.c.b16 %v1237, %v1236
        %v1243 = vsel %vm518, %v1218, 0
        %1245 = vmatprep.subr.bf16.mxu0 0
        %1246 = vmatpush1.bf16.msra.mxu0 %v1238
        %1247 = vmatprep.subr.bf16.mxu0 0
        %1248 = vmatpush1.bf16.msra.mxu0 %v1239
        %1249 = vmatprep.subr.bf16.mxu0 0
        %1250 = vmatpush1.bf16.msra.mxu0 0
        %1251 = vmatprep.subr.bf16.mxu0 0
        %1252 = vmatpush1.bf16.msra.mxu0 0
        %1253 = vmatprep.subr.bf16.mxu0 0
        %1254 = vmatpush1.bf16.msra.mxu0 0
        %1255 = vmatprep.subr.bf16.mxu0 0
        %1256 = vmatpush1.bf16.msra.mxu0 0
        %1257 = vmatprep.subr.bf16.mxu0 0
        %1258 = vmatpush1.bf16.msra.mxu0 0
        %1259 = vmatprep.subr.bf16.mxu0 0
        %1260 = vmatpush1.bf16.msra.mxu0 0
        %1261 = vmatprep.subr.bf16.mxu0 0
        %1262 = vmatpush1.bf16.msra.mxu0 0
        %1263 = vmatprep.subr.bf16.mxu0 0
        %1264 = vmatpush1.bf16.msra.mxu0 0
        %1265 = vmatprep.subr.bf16.mxu0 0
        %1266 = vmatpush1.bf16.msra.mxu0 0
        %1267 = vmatprep.subr.bf16.mxu0 0
        %1268 = vmatpush1.bf16.msra.mxu0 0
        %1269 = vmatprep.subr.bf16.mxu0 0
        %1270 = vmatpush1.bf16.msra.mxu0 0
        %1271 = vmatprep.subr.bf16.mxu0 0
        %1272 = vmatpush1.bf16.msra.mxu0 0
        %1273 = vmatprep.subr.bf16.mxu0 0
        %1274 = vmatpush1.bf16.msra.mxu0 0
        %1275 = vmatprep.subr.bf16.mxu0 0
        %1276 = vmatpush1.bf16.msra.mxu0 0
        %1277 = vmatprep.mubr.bf16.mxu0 0
        %1278 = vmatmul.mubr.bf16.gmra.mrb[0].mxu0 %v1243
        %v1279 = vpop.f32.mrb[0].mxu0
        %v1280 = vadd.f32 %v1228, %v1279
        %v1281 = vpop.f32.mrb[0].mxu0
        %v1282 = vpop.f32.mrb[0].mxu0
        %v1283 = vpop.f32.mrb[0].mxu0
        %1284 = vdwg.mxu0
        %v1285 = vmul.f32 %v1280, 0.5
        %v1286 = vmul.f32 %v1280, 0.70710677
        %v1287 = verf.f32.pop %v1286
        %v1288 = vadd.f32 %v1287, 1.0
        %v1289 = vmul.f32 %v1285, %v1288
        %v1290 = vpack.c.bf16 %v1289, %v1289
        %v1291 = vld [vmem:[%s12] sm:$0xf]
        %v1292 = vld [vmem:[%s12 + $0x4] sm:$0xf]
        %v1293 = vld [vmem:[%s12 + $0x8] sm:$0xf]
        %v1294 = vld [vmem:[%s12 + $0xc] sm:$0xf]
        %v1295 = vld [vmem:[%s12 + $0x10] sm:$0xf]
        %v1296 = vld [vmem:[%s12 + $0x14] sm:$0xf]
        %v1297 = vld [vmem:[%s12 + $0x18] sm:$0xf]
        %v1298 = vld [vmem:[%s12 + $0x1c] sm:$0xf]
        %v1299 = vld [vmem:[%s12 + $0x20] sm:$0xf]
        %v1300 = vld [vmem:[%s12 + $0x24] sm:$0xf]
        %v1301 = vld [vmem:[%s12 + $0x28] sm:$0xf]
        %v1302 = vld [vmem:[%s12 + $0x2c] sm:$0xf]
        %v1303 = vld [vmem:[%s12 + $0x30] sm:$0xf]
        %v1304 = vld [vmem:[%s12 + $0x34] sm:$0xf]
        %v1305 = vld [vmem:[%s12 + $0x38] sm:$0xf]
        %v1306 = vld [vmem:[%s12 + $0x3c] sm:$0xf]
        %v1307 = vld [vmem:[%s13] sm:$0x1]
        %v1309 = vlaneseq
        %v1310 = vshrl.u32 %v1309, 7
        %v1311 = vsub.s32 0, %v1310
        %v1312 = vrot.slane %v1307, %v1311
        %v1330 = vunpack.c.l.b16 %v1291
        %v1331 = vunpack.c.l.b16 %v1292
        %v1332 = vunpack.c.l.b16 %v1293
        %v1333 = vunpack.c.l.b16 %v1294
        %v1334 = vunpack.c.l.b16 %v1295
        %v1335 = vunpack.c.l.b16 %v1296
        %v1336 = vunpack.c.l.b16 %v1297
        %v1337 = vunpack.c.l.b16 %v1298
        %v1338 = vunpack.c.l.b16 %v1299
        %v1339 = vunpack.c.l.b16 %v1300
        %v1340 = vunpack.c.l.b16 %v1301
        %v1341 = vunpack.c.l.b16 %v1302
        %v1342 = vunpack.c.l.b16 %v1303
        %v1343 = vunpack.c.l.b16 %v1304
        %v1344 = vunpack.c.l.b16 %v1305
        %v1345 = vunpack.c.l.b16 %v1306
        %v1346 = vpack.c.b16 %v1331, %v1330
        %v1347 = vpack.c.b16 %v1333, %v1332
        %v1348 = vpack.c.b16 %v1335, %v1334
        %v1349 = vpack.c.b16 %v1337, %v1336
        %v1350 = vpack.c.b16 %v1339, %v1338
        %v1351 = vpack.c.b16 %v1341, %v1340
        %v1352 = vpack.c.b16 %v1343, %v1342
        %v1353 = vpack.c.b16 %v1345, %v1344
        %1362 = vmatprep.subr.bf16.mxu0 0
        %1363 = vmatpush1.bf16.msra.mxu0 %v1346
        %1364 = vmatprep.subr.bf16.mxu0 0
        %1365 = vmatpush1.bf16.msra.mxu0 %v1347
        %1366 = vmatprep.subr.bf16.mxu0 0
        %1367 = vmatpush1.bf16.msra.mxu0 %v1348
        %1368 = vmatprep.subr.bf16.mxu0 0
        %1369 = vmatpush1.bf16.msra.mxu0 %v1349
        %1370 = vmatprep.subr.bf16.mxu0 0
        %1371 = vmatpush1.bf16.msra.mxu0 %v1350
        %1372 = vmatprep.subr.bf16.mxu0 0
        %1373 = vmatpush1.bf16.msra.mxu0 %v1351
        %1374 = vmatprep.subr.bf16.mxu0 0
        %1375 = vmatpush1.bf16.msra.mxu0 %v1352
        %1376 = vmatprep.subr.bf16.mxu0 0
        %1377 = vmatpush1.bf16.msra.mxu0 %v1353
        %1378 = vmatprep.subr.bf16.mxu0 0
        %1379 = vmatpush1.bf16.msra.mxu0 0
        %1380 = vmatprep.subr.bf16.mxu0 0
        %1381 = vmatpush1.bf16.msra.mxu0 0
        %1382 = vmatprep.subr.bf16.mxu0 0
        %1383 = vmatpush1.bf16.msra.mxu0 0
        %1384 = vmatprep.subr.bf16.mxu0 0
        %1385 = vmatpush1.bf16.msra.mxu0 0
        %1386 = vmatprep.subr.bf16.mxu0 0
        %1387 = vmatpush1.bf16.msra.mxu0 0
        %1388 = vmatprep.subr.bf16.mxu0 0
        %1389 = vmatpush1.bf16.msra.mxu0 0
        %1390 = vmatprep.subr.bf16.mxu0 0
        %1391 = vmatpush1.bf16.msra.mxu0 0
        %1392 = vmatprep.subr.bf16.mxu0 0
        %1393 = vmatpush1.bf16.msra.mxu0 0
        %1394 = vmatprep.mubr.bf16.mxu0 0
        %1395 = vmatmul.mubr.bf16.gmra.mrb[0].mxu0 %v1290
        %v1396 = vpop.f32.mrb[0].mxu0
        %v1397 = vadd.f32 %v1312, %v1396
        %v1398 = vpop.f32.mrb[0].mxu0
        %v1399 = vpop.f32.mrb[0].mxu0
        %v1400 = vpop.f32.mrb[0].mxu0
        %1401 = vdwg.mxu0
        %v1402 = vadd.f32 %v1186, %v1397
        %1403 = vst.msk [vmem:[%s509] sm:$0xff] %vm518, %v1402
        %s1404 = sand.u32 %s338, 1
        %s1405 = scalar_lea.sflag [#allocation4], %s1404
        %s1406 = sand.u32 %s338, 1
        %s1407 = smul.addr %s1406, 8
        %s1408 = scalar_lea.vmem [#allocation10], %s1407
        // Predicated region
        $region93: #{tpu_custom_call.1} parent=75 // pred_check
          %p1409 = pneg %p348
        $region94: #{tpu_custom_call.1} parent=75 // pred_check_branch
          %1411 = sbr.rel (%p1409) target = $region96
        $region95: #{tpu_custom_call.1} parent=75 // pred_region
          %s1413 = ssub.s32 128, 128
          %1414 = vsyncadd %s1405, %s1413
          %s1415 = smul.addr %s31, 128
          %s1416 = scalar_lea.hbm %s14, %s1415
          %s1418 = sshll.u32 %s1408, 4
          %s1419 = int_to_ptr.vmem [resolvable:$true] %s1418
          %1421 = dma.vmem_to_hbm [thread:$0]  %s1419, 128, %s1416, %s1405
        $region96: #{tpu_custom_call.1} parent=75 // pred_fallthru
          _
      $region76: #{tpu_custom_call.1} parent=5 // pred_fallthru
        _
      %p1422 = scmp.le.s32.totalorder 2, %s26
      // Predicated region
      $region97: #{tpu_custom_call.1} parent=5 // pred_check
        %p1423 = pneg %p1422
      $region98: #{tpu_custom_call.1} parent=5 // pred_check_branch
        %1425 = sbr.rel (%p1423) target = $region100
      $region99: #{tpu_custom_call.1} parent=5 // pred_region
        %s1426 = ssub.s32 %s26, 2
        // Predicated region
        $region101: #{tpu_custom_call.1} parent=99 // pred_check
          %p1427 = pneg %p354
        $region102: #{tpu_custom_call.1} parent=99 // pred_check_branch
          %1429 = sbr.rel (%p1427) target = $region104
        $region103: #{tpu_custom_call.1} parent=99 // pred_region
          %s1430 = sand.u32 %s339, 1
          %s1431 = scalar_lea.sflag [#allocation4], %s1430
          %s1432 = sand.u32 %s339, 1
          %s1433 = smul.addr %s1432, 8
          %s1434 = scalar_lea.vmem [#allocation10], %s1433
          %1435 = dma.done %s1431, 128
        $region104: #{tpu_custom_call.1} parent=99 // pred_fallthru
          _
      $region100: #{tpu_custom_call.1} parent=5 // pred_fallthru
        _
    $region6: #{tpu_custom_call.1} parent=1 // loop_footer
      %s30 = sadd.s32 1, %s26
    $region7: #{tpu_custom_call.1} parent=1 // loop_footer_branch
      %25 = sbr.rel target = $region3
    $region8: #{tpu_custom_call.1} parent=1 // loop_exit
      _
    %1436 = vsyncpa [#allocation3], 1
    %s1437 = scalar_lea.sflag [#allocation3], 1
    %1438 = vsyncpa %s1437, 1
    %1439 = vsyncpa [#allocation6], 1
    %1440 = vsyncpa [#allocation9], 1
    %1441 = vsyncpa [#allocation4], 1
    %s1442 = scalar_lea.sflag [#allocation4], 1
    %1443 = vsyncpa %s1442, 1

</llo_original>
